<compile_context>
chip_gen: v7x
topology: tpu7x:2x2x1
jax: 0.10.0
libtpu: 0.0.40
codegen_flags: <defaults>
</compile_context>

<pallas_src>
import functools
import math

import jax
import jax.numpy as jnp
from jax.experimental import pallas as pl
from jax.experimental.pallas import tpu as pltpu


# ----------------------- generation-aware configuration ---------------------

def _tpu_vmem_capacity_bytes():
    try:
        info = pltpu.get_tpu_info()
        cap = getattr(info, "vmem_capacity_bytes", None)
        if cap:
            return int(cap)
    except Exception:
        pass
    return 64 * 1024 * 1024          # conservative (v7x per-TC VMEM)


_VMEM_CAP = _tpu_vmem_capacity_bytes()
VMEM_LIMIT = max(32 * 1024 * 1024, min(int(_VMEM_CAP * 3 // 4), 96 * 1024 * 1024))
_BIG_VMEM = _VMEM_CAP >= 100 * 1024 * 1024    # 128 MiB parts (v5e / v6e)

ROW_TILE = 256                                 # M tile for GEMM / norm / FFN
MM_TN = 512 if _BIG_VMEM else 256
MM_TK = 512
FFN_TH = 512 if _BIG_VMEM else 256             # hidden tile; 256 keeps v7x in budget
ATTN_TQ = 256
ATTN_TKV = 512


def _round_up(x, m):
    return ((x + m - 1) // m) * m


def _tile(total, target, align=128):
    """Largest divisor of `total` <= target that is a multiple of `align`
    (falls back to multiples of 8, then the full dim)."""
    if total <= target:
        return total
    for a in (align, 8):
        t = (target // a) * a
        while t >= a:
            if total % t == 0:
                return t
            t -= a
    # TODO(synk): pad instead of a single whole-dim block for pathological dims.
    return total


def _row_tile(M, target):
    """Row tiling via padding: pad M to a multiple of 8, pick an exact divisor tile."""
    Mp = _round_up(max(M, 1), 8)
    tm = _tile(Mp, target)
    return tm, Mp


def _pad_rows(x2d, Mp):
    M = x2d.shape[0]
    if Mp != M:
        x2d = jnp.pad(x2d, ((0, Mp - M), (0, 0)))
    return x2d


# ----------------------------- Pallas kernels -------------------------------

def _rmsnorm_kernel(x_ref, w_ref, o_ref, *, eps):
    x = x_ref[...].astype(jnp.float32)                       # (tm, D) f32 math
    ms = jnp.mean(x * x, axis=-1, keepdims=True)
    o_ref[...] = (x * jax.lax.rsqrt(ms + eps) * w_ref[...]).astype(o_ref.dtype)


def _matmul_kernel(x_ref, w_ref, o_ref, acc_ref):
    @pl.when(pl.program_id(2) == 0)
    def _():
        acc_ref[...] = jnp.zeros_like(acc_ref)
    acc_ref[...] += jnp.dot(x_ref[...], w_ref[...],
                            preferred_element_type=jnp.float32)

    @pl.when(pl.program_id(2) == pl.num_programs(2) - 1)
    def _():
        o_ref[...] = acc_ref[...].astype(o_ref.dtype)


def _matmul_kernel_f32out(x_ref, w_ref, o_ref):
    # f32 output: accumulate directly into the resident output block (no scratch).
    @pl.when(pl.program_id(2) == 0)
    def _():
        o_ref[...] = jnp.zeros_like(o_ref)
    o_ref[...] += jnp.dot(x_ref[...], w_ref[...],
                          preferred_element_type=jnp.float32)


def _ffn_kernel(x_ref, w1_ref, w3_ref, w2_ref, o_ref, acc_ref):
    j = pl.program_id(1)

    @pl.when(j == 0)
    def _():
        acc_ref[...] = jnp.zeros_like(acc_ref)

    x = x_ref[...]                                           # (tm, D) bf16
    h1 = jnp.dot(x, w1_ref[...], preferred_element_type=jnp.float32)
    h3 = jnp.dot(x, w3_ref[...], preferred_element_type=jnp.float32)
    h = (h1 * jax.nn.sigmoid(h1)) * h3                       # SiLU(w1 x) * (w3 x)
    acc_ref[...] += jnp.dot(h.astype(jnp.bfloat16), w2_ref[...],
                            preferred_element_type=jnp.float32)

    @pl.when(j == pl.num_programs(1) - 1)
    def _():
        o_ref[...] = acc_ref[...].astype(o_ref.dtype)


def _flash_attn_kernel(q_ref, k_ref, v_ref, o_ref, m_sc, l_sc, acc_sc,
                       *, scale, start_pos, block_q, block_kv):
    qi = pl.program_id(1)
    kv_idx = pl.program_id(2)

    @pl.when(kv_idx == 0)
    def _():
        m_sc[...] = jnp.full_like(m_sc, -jnp.inf)
        l_sc[...] = jnp.zeros_like(l_sc)
        acc_sc[...] = jnp.zeros_like(acc_sc)

    q_min = start_pos + qi * block_q                         # first query position
    q_max = q_min + block_q - 1                              # last query position
    kv_min = kv_idx * block_kv
    kv_max = kv_min + block_kv - 1

    def step(apply_mask):
        # Pre-scale q per tile: O(tq*Dh) instead of O(tq*tkv) per KV step.
        q = (q_ref[0].astype(jnp.float32) * scale).astype(jnp.bfloat16)
        k = k_ref[0]
        v = v_ref[0]
        s = jax.lax.dot_general(q, k, (((1,), (1,)), ((), ())),
                                preferred_element_type=jnp.float32)  # (tq, tkv)
        if apply_mask:
            tq, tkv = s.shape
            q_pos = q_min + jax.lax.broadcasted_iota(jnp.int32, (tq, tkv), 0)
            k_pos = kv_min + jax.lax.broadcasted_iota(jnp.int32, (tq, tkv), 1)
            s = jnp.where(k_pos <= q_pos, s, -1e30)          # finite -> no NaN rows
        m_prev = m_sc[...]
        m_new = jnp.maximum(m_prev, jnp.max(s, axis=-1, keepdims=True))
        alpha = jnp.exp(m_prev - m_new)
        p = jnp.exp(s - m_new)
        l_sc[...] = alpha * l_sc[...] + jnp.sum(p, axis=-1, keepdims=True)
        acc_sc[...] = alpha * acc_sc[...] + jnp.dot(p.astype(v.dtype), v,
                                                    preferred_element_type=jnp.float32)
        m_sc[...] = m_new

    # Interior (fully visible) blocks: no mask generation / where.
    @pl.when(kv_max <= q_min)
    def _():
        step(False)

    # Diagonal blocks: build the causal mask in-kernel.
    @pl.when(jnp.logical_and(kv_min <= q_max, kv_max > q_min))
    def _():
        step(True)

    # Blocks fully above the diagonal (kv_min > q_max) are skipped entirely.

    @pl.when(kv_idx == pl.num_programs(2) - 1)
    def _():
        o_ref[0] = (acc_sc[...] *
                    pl.reciprocal(l_sc[...], approx=True)).astype(o_ref.dtype)


# ------------------------------ Pallas wrappers ------------------------------

def rmsnorm(x2d, w, eps, out_dtype=jnp.bfloat16, tm_target=None):
    M, D = x2d.shape
    tm, Mp = _row_tile(M, tm_target or ROW_TILE)
    xp = _pad_rows(x2d.astype(jnp.bfloat16), Mp)
    w2d = w.reshape(1, D).astype(jnp.float32)
    out = pl.pallas_call(
        functools.partial(_rmsnorm_kernel, eps=eps),
        out_shape=jax.ShapeDtypeStruct((Mp, D), out_dtype),
        grid=(Mp // tm,),
        in_specs=[pl.BlockSpec((tm, D), lambda i: (i, 0)),
                  pl.BlockSpec((1, D), lambda i: (0, 0))],
        out_specs=pl.BlockSpec((tm, D), lambda i: (i, 0)),
        compiler_params=pltpu.CompilerParams(
            dimension_semantics=("parallel",),
            vmem_limit_bytes=VMEM_LIMIT),
    )(xp, w2d)
    return out[:M] if Mp != M else out


def matmul(x2d, w, out_dtype=jnp.bfloat16, tm=None, tn=None, tk=None):
    # x2d: (M, K), w: (K, N) pre-transposed (in, out)  ->  (M, N)
    M, K = x2d.shape
    _, N = w.shape
    tm, Mp = _row_tile(M, tm or ROW_TILE)
    tn = _tile(N, tn or MM_TN)
    tk = _tile(K, tk or MM_TK)
    xp = _pad_rows(x2d.astype(jnp.bfloat16), Mp)
    out_bytes = Mp * N * jnp.dtype(out_dtype).itemsize
    cost = pl.CostEstimate(flops=2 * Mp * N * K, transcendentals=0,
                           bytes_accessed=2 * Mp * K + 2 * K * N + out_bytes)
    if out_dtype == jnp.float32:
        kernel, scratch = _matmul_kernel_f32out, []
    else:
        kernel, scratch = _matmul_kernel, [pltpu.VMEM((tm, tn), jnp.float32)]
    out = pl.pallas_call(
        kernel,
        out_shape=jax.ShapeDtypeStruct((Mp, N), out_dtype),
        grid=(Mp // tm, N // tn, K // tk),
        in_specs=[pl.BlockSpec((tm, tk), lambda i, j, k: (i, k)),
                  pl.BlockSpec((tk, tn), lambda i, j, k: (k, j))],
        out_specs=pl.BlockSpec((tm, tn), lambda i, j, k: (i, j)),
        scratch_shapes=scratch,
        compiler_params=pltpu.CompilerParams(
            dimension_semantics=("parallel", "parallel", "arbitrary"),
            vmem_limit_bytes=VMEM_LIMIT),
        cost_estimate=cost,
    )(xp, w.astype(jnp.bfloat16))
    return out[:M] if Mp != M else out


def ffn(x2d, w1t, w3t, w2t, tm=None, th=None):
    # x2d: (M, D) bf16, w1t/w3t: (D, Hd), w2t: (Hd, D)  ->  (M, D) bf16
    M, D = x2d.shape
    Hd = w1t.shape[1]
    tm, Mp = _row_tile(M, tm or ROW_TILE)
    th = _tile(Hd, th or FFN_TH)
    xp = _pad_rows(x2d.astype(jnp.bfloat16), Mp)
    cost = pl.CostEstimate(flops=6 * Mp * Hd * D, transcendentals=Mp * Hd,
                           bytes_accessed=2 * Mp * D + 6 * D * Hd + 2 * Mp * D)
    out = pl.pallas_call(
        _ffn_kernel,
        out_shape=jax.ShapeDtypeStruct((Mp, D), jnp.bfloat16),
        grid=(Mp // tm, Hd // th),
        in_specs=[pl.BlockSpec((tm, D), lambda i, j: (i, 0)),
                  pl.BlockSpec((D, th), lambda i, j: (0, j)),
                  pl.BlockSpec((D, th), lambda i, j: (0, j)),
                  pl.BlockSpec((th, D), lambda i, j: (j, 0))],
        out_specs=pl.BlockSpec((tm, D), lambda i, j: (i, 0)),
        scratch_shapes=[pltpu.VMEM((tm, D), jnp.float32)],
        compiler_params=pltpu.CompilerParams(
            dimension_semantics=("parallel", "arbitrary"),
            vmem_limit_bytes=VMEM_LIMIT),
        cost_estimate=cost,
    )(xp, w1t.astype(jnp.bfloat16), w3t.astype(jnp.bfloat16),
      w2t.astype(jnp.bfloat16))
    return out[:M] if Mp != M else out


def flash_attention(q, k, v, *, scale, start_pos, block_q=ATTN_TQ, block_kv=ATTN_TKV):
    # q: (B*H, S, Dh), k/v: (B*H, Skv, Dh), bf16.  Causal mask built in-kernel.
    BH, S, Dh = q.shape
    Skv = k.shape[1]
    tq = _tile(S, block_q)
    tkv = _tile(Skv, block_kv)
    kernel = functools.partial(_flash_attn_kernel, scale=scale,
                               start_pos=start_pos, block_q=tq, block_kv=tkv)
    return pl.pallas_call(
        kernel,
        out_shape=jax.ShapeDtypeStruct((BH, S, Dh), jnp.bfloat16),
        grid=(BH, S // tq, Skv // tkv),
        in_specs=[pl.BlockSpec((1, tq, Dh), lambda bh, qi, kv: (bh, qi, 0)),
                  pl.BlockSpec((1, tkv, Dh), lambda bh, qi, kv: (bh, kv, 0)),
                  pl.BlockSpec((1, tkv, Dh), lambda bh, qi, kv: (bh, kv, 0))],
        out_specs=pl.BlockSpec((1, tq, Dh), lambda bh, qi, kv: (bh, qi, 0)),
        scratch_shapes=[pltpu.VMEM((tq, 1), jnp.float32),
                        pltpu.VMEM((tq, 1), jnp.float32),
                        pltpu.VMEM((tq, Dh), jnp.float32)],
        compiler_params=pltpu.CompilerParams(
            dimension_semantics=("parallel", "parallel", "arbitrary"),
            vmem_limit_bytes=VMEM_LIMIT),
    )(q.astype(jnp.bfloat16), k.astype(jnp.bfloat16), v.astype(jnp.bfloat16))


# --------------------------------- JAX glue ----------------------------------

def precompute_freqs(dim, end, theta=10000.0):
    freqs = 1.0 / theta ** (jnp.arange(0, dim, 2)[: dim // 2].astype(jnp.float32) / dim)
    t = jnp.arange(end, dtype=jnp.float32)
    freqs = jnp.outer(t, freqs)                              # (end, dim//2)
    return jnp.cos(freqs), jnp.sin(freqs)


def apply_rotary_emb(xq, xk, cos, sin):
    # xq/xk: (B, S, H, Dh); cos/sin: (S, Dh//2). Interleaved (re, im) pairs,
    # matching torch.view_as_complex on a trailing reshape (..., Dh//2, 2).
    def rot(x):
        dt = x.dtype
        xr = x.astype(jnp.float32).reshape(*x.shape[:-1], -1, 2)
        x0, x1 = xr[..., 0], xr[..., 1]
        c = cos[None, :, None, :]
        s = sin[None, :, None, :]
        o0 = x0 * c - x1 * s
        o1 = x0 * s + x1 * c
        return jnp.stack([o0, o1], axis=-1).reshape(x.shape).astype(dt)
    return rot(xq), rot(xk)


def ffn_hidden_dim(dim, multiple_of, ffn_dim_multiplier=None):
    hidden = 4 * dim
    hidden = int(2 * hidden / 3)
    if ffn_dim_multiplier is not None:
        hidden = int(ffn_dim_multiplier * hidden)
    return multiple_of * ((hidden + multiple_of - 1) // multiple_of)


def init_params(key, args):
    dim = args["dim"]
    vocab = args["vocab_size"]
    n_heads = args["n_heads"]
    head_dim = dim // n_heads
    hidden = ffn_hidden_dim(dim, args["multiple_of"], args.get("ffn_dim_multiplier"))

    def normal(k, shape, dtype=jnp.bfloat16):
        return (0.02 * jax.random.normal(k, shape, dtype=jnp.float32)).astype(dtype)

    keys = jax.random.split(key, 2 + 5 * args["n_layers"])
    params = {
        "tok_emb": normal(keys[0], (vocab, dim), jnp.float32),
        # Pre-transposed (in, out) bf16 weights; fused Q|K|V.
        "output_w": normal(keys[1], (dim, vocab)),
        "norm_w": jnp.ones((dim,), jnp.float32),
        "layers": [],
    }
    ki = 2
    for _ in range(args["n_layers"]):
        lp = {
            "wqkv": normal(keys[ki + 0], (dim, 3 * n_heads * head_dim)),
            "wo":   normal(keys[ki + 1], (n_heads * head_dim, dim)),
            "w1":   normal(keys[ki + 2], (dim, hidden)),
            "w2":   normal(keys[ki + 3], (hidden, dim)),
            "w3":   normal(keys[ki + 4], (dim, hidden)),
            "attn_norm_w": jnp.ones((dim,), jnp.float32),
            "ffn_norm_w": jnp.ones((dim,), jnp.float32),
        }
        params["layers"].append(lp)
        ki += 5
    cos, sin = precompute_freqs(head_dim, args["max_seq_len"] * 2)
    params["freqs_cos"] = cos
    params["freqs_sin"] = sin
    return params


def block_forward(lp, x, start_pos, cos, sin, args):
    B, S, dim = x.shape
    n_heads = args["n_heads"]   # TODO(synk): no GQA/MQA (n_kv_heads == n_heads), matching the spec's default.
    head_dim = dim // n_heads
    eps = args["norm_eps"]
    M = B * S

    # ---- attention sub-block ----
    xn = rmsnorm(x.reshape(M, dim), lp["attn_norm_w"], eps)           # bf16
    qkv = matmul(xn, lp["wqkv"])                                      # fused QKV, bf16 (M, 3*dim)
    xq, xk, xv = jnp.split(qkv, 3, axis=-1)
    xq = xq.reshape(B, S, n_heads, head_dim)
    xk = xk.reshape(B, S, n_heads, head_dim)
    xv = xv.reshape(B, S, n_heads, head_dim)
    xq, xk = apply_rotary_emb(xq, xk, cos, sin)

    # TODO(synk): matches the fresh zero-initialized KV cache of the reference;
    # persistent cross-call cache state is not carried here.
    if start_pos > 0:
        pad = jnp.zeros((B, start_pos, n_heads, head_dim), xk.dtype)
        keys = jnp.concatenate([pad, xk], axis=1)
        values = jnp.concatenate([pad, xv], axis=1)
    else:
        keys, values = xk, xv
    Skv = start_pos + S

    # TODO(synk): head transposes kept in JAX (BlockSpec head-indexing violates
    # the (8,128) block constraint at small head_dim).
    q = xq.transpose(0, 2, 1, 3).reshape(B * n_heads, S, head_dim)
    k = keys.transpose(0, 2, 1, 3).reshape(B * n_heads, Skv, head_dim)
    v = values.transpose(0, 2, 1, 3).reshape(B * n_heads, Skv, head_dim)

    attn = flash_attention(q, k, v, scale=1.0 / math.sqrt(head_dim),
                           start_pos=start_pos)                        # (B*H, S, Dh) bf16
    attn = (attn.reshape(B, n_heads, S, head_dim)
                .transpose(0, 2, 1, 3)
                .reshape(M, dim))
    h = x + matmul(attn, lp["wo"]).reshape(B, S, dim)                  # bf16 residual

    # ---- feed-forward sub-block ----
    hn = rmsnorm(h.reshape(M, dim), lp["ffn_norm_w"], eps)             # bf16
    ff = ffn(hn, lp["w1"], lp["w3"], lp["w2"]).reshape(B, S, dim)      # bf16
    return h + ff


def transformer_forward(params, tokens, start_pos, args):
    B, S = tokens.shape
    dim = args["dim"]
    h = params["tok_emb"][tokens].astype(jnp.bfloat16)                 # embedding gather (plain JAX)
    cos = params["freqs_cos"][start_pos: start_pos + S]
    sin = params["freqs_sin"][start_pos: start_pos + S]

    # Causal mask is generated inside the attention kernel via iota compare.
    for lp in params["layers"]:
        h = block_forward(lp, h, start_pos, cos, sin, args)

    h2 = rmsnorm(h.reshape(B * S, dim), params["norm_w"], args["norm_eps"])
    logits = matmul(h2, params["output_w"], out_dtype=jnp.float32).reshape(B, S, -1)
    return logits


# ----------------------------------- main ------------------------------------

if __name__ == "__main__":
    args = dict(
        dim=64,
        n_layers=2,
        n_heads=4,
        vocab_size=128,
        multiple_of=32,
        ffn_dim_multiplier=None,
        norm_eps=1e-5,
        max_batch_size=2,
        max_seq_len=16,
    )
    key = jax.random.PRNGKey(0)
    params = init_params(key, args)

    tok_key = jax.random.fold_in(key, 999)
    tokens = jax.random.randint(tok_key, (2, 8), 0, args["vocab_size"], dtype=jnp.int32)
    start_pos = 0

    fwd = jax.jit(functools.partial(transformer_forward, start_pos=start_pos, args=args))
    logits = fwd(params, tokens)
    jax.block_until_ready(logits)
    assert logits.shape == (2, 8, args["vocab_size"])
    assert logits.dtype == jnp.float32
    assert bool(jnp.all(jnp.isfinite(logits)))
    print("KERNEL_OK")
</pallas_src>

<mosaic_0001>
module attributes {stable_mosaic.version = 11 : i64} {
  func.func @_matmul_kernel(%arg0: i32, %arg1: i32, %arg2: i32, %arg3: memref<16x64xbf16, #tpu.memory_space<vmem>>, %arg4: memref<64x192xbf16, #tpu.memory_space<vmem>>, %arg5: memref<16x192xbf16, #tpu.memory_space<vmem>>, %arg6: memref<16x192xf32, #tpu.memory_space<vmem>>) attributes {dimension_semantics = [#tpu.dimension_semantics<parallel>, #tpu.dimension_semantics<parallel>, #tpu.dimension_semantics<arbitrary>], iteration_bounds = array<i64: 1, 1, 1>, scalar_prefetch = 0 : i64, scratch_operands = 1 : i64, tpu.core_type = #tpu.core_type<tc>, window_params = [{transform_indices = @transform_0, window_bounds = array<i64: 16, 64>}, {transform_indices = @transform_1, window_bounds = array<i64: 64, 192>}, {transform_indices = @transform_2, window_bounds = array<i64: 16, 192>}]} {
    %c0_i32 = arith.constant 0 : i32
    %0 = arith.cmpi eq, %arg2, %c0_i32 : i32
    %1 = arith.extui %0 : i1 to i32
    %c0_i32_0 = arith.constant 0 : i32
    %2 = arith.cmpi ne, %1, %c0_i32_0 : i32
    scf.if %2 {
      %cst_10 = arith.constant 0.000000e+00 : f32
      %12 = vector.broadcast %cst_10 : f32 to vector<16x192xf32>
      %c0_11 = arith.constant 0 : index
      %c0_12 = arith.constant 0 : index
      %13 = vector.load %arg6[%c0_11, %c0_12] : memref<16x192xf32, #tpu.memory_space<vmem>>, vector<16x192xf32>
      tpu.vector_store %arg6[%c0_11, %c0_12], %12 {strides = array<i32>} : memref<16x192xf32, #tpu.memory_space<vmem>>, vector<16x192xf32>,
    } else {
    }
    %c0 = arith.constant 0 : index
    %c0_1 = arith.constant 0 : index
    %3 = vector.load %arg6[%c0, %c0_1] : memref<16x192xf32, #tpu.memory_space<vmem>>, vector<16x192xf32>
    %c0_2 = arith.constant 0 : index
    %c0_3 = arith.constant 0 : index
    %4 = vector.load %arg3[%c0_2, %c0_3] : memref<16x64xbf16, #tpu.memory_space<vmem>>, vector<16x64xbf16>
    %c0_4 = arith.constant 0 : index
    %c0_5 = arith.constant 0 : index
    %5 = vector.load %arg4[%c0_4, %c0_5] : memref<64x192xbf16, #tpu.memory_space<vmem>>, vector<64x192xbf16>
    %cst = arith.constant dense<0.000000e+00> : vector<16x192xf32>
    %6 = tpu.matmul %4, %5, %cst {dimension_numbers = #tpu.dot_dimension_numbers<[1], [0], [0], [1], [0, 0, 1, 1], [], []>} : vector<16x64xbf16>, vector<64x192xbf16>, vector<16x192xf32> -> vector<16x192xf32>
    %7 = arith.addf %3, %6 : vector<16x192xf32>
    %c0_6 = arith.constant 0 : index
    %c0_7 = arith.constant 0 : index
    %8 = vector.load %arg6[%c0_6, %c0_7] : memref<16x192xf32, #tpu.memory_space<vmem>>, vector<16x192xf32>
    tpu.vector_store %arg6[%c0_6, %c0_7], %7 {strides = array<i32>} : memref<16x192xf32, #tpu.memory_space<vmem>>, vector<16x192xf32>,
    %c0_i32_8 = arith.constant 0 : i32
    %9 = arith.cmpi eq, %arg2, %c0_i32_8 : i32
    %10 = arith.extui %9 : i1 to i32
    %c0_i32_9 = arith.constant 0 : i32
    %11 = arith.cmpi ne, %10, %c0_i32_9 : i32
    scf.if %11 {
      %c0_10 = arith.constant 0 : index
      %c0_11 = arith.constant 0 : index
      %12 = vector.load %arg6[%c0_10, %c0_11] : memref<16x192xf32, #tpu.memory_space<vmem>>, vector<16x192xf32>
      %13 = arith.truncf %12 : vector<16x192xf32> to vector<16x192xbf16>
      %c0_12 = arith.constant 0 : index
      %c0_13 = arith.constant 0 : index
      %14 = vector.load %arg5[%c0_12, %c0_13] : memref<16x192xbf16, #tpu.memory_space<vmem>>, vector<16x192xbf16>
      tpu.vector_store %arg5[%c0_12, %c0_13], %13 {strides = array<i32>} : memref<16x192xbf16, #tpu.memory_space<vmem>>, vector<16x192xbf16>,
    } else {
    }
    return
  }
  func.func @transform_0(%arg0: i32, %arg1: i32, %arg2: i32) -> (i32, i32) {
    %c0_i32 = arith.constant 0 : i32
    return %arg0, %arg2 : i32, i32
  }
  func.func @transform_1(%arg0: i32, %arg1: i32, %arg2: i32) -> (i32, i32) {
    %c0_i32 = arith.constant 0 : i32
    return %arg2, %arg1 : i32, i32
  }
  func.func @transform_2(%arg0: i32, %arg1: i32, %arg2: i32) -> (i32, i32) {
    %c0_i32 = arith.constant 0 : i32
    return %arg0, %arg1 : i32, i32
  }
}

module attributes {stable_mosaic.version = 11 : i64} {
  func.func @_rmsnorm_kernel(%arg0: i32, %arg1: memref<16x64xbf16, #tpu.memory_space<vmem>>, %arg2: memref<1x64xf32, #tpu.memory_space<vmem>>, %arg3: memref<16x64xbf16, #tpu.memory_space<vmem>>) attributes {dimension_semantics = [#tpu.dimension_semantics<parallel>], iteration_bounds = array<i64: 1>, scalar_prefetch = 0 : i64, scratch_operands = 0 : i64, tpu.core_type = #tpu.core_type<tc>, window_params = [{transform_indices = @transform_0, window_bounds = array<i64: 16, 64>}, {pipeline_mode = #tpu.pipeline_mode<synchronous>, transform_indices = @transform_1, window_bounds = array<i64: 1, 64>}, {transform_indices = @transform_2, window_bounds = array<i64: 16, 64>}]} {
    %c0 = arith.constant 0 : index
    %c0_0 = arith.constant 0 : index
    %0 = vector.load %arg1[%c0, %c0_0] : memref<16x64xbf16, #tpu.memory_space<vmem>>, vector<16x64xbf16>
    %1 = arith.extf %0 : vector<16x64xbf16> to vector<16x64xf32>
    %2 = arith.mulf %1, %1 : vector<16x64xf32>
    %cst = arith.constant dense<0.000000e+00> : vector<16xf32>
    %3 = vector.multi_reduction <add>, %2, %cst [1] : vector<16x64xf32> to vector<16xf32>
    %4 = vector.shape_cast %3 : vector<16xf32> to vector<16x1xf32>
    %cst_1 = arith.constant 6.400000e+01 : f32
    %5 = vector.broadcast %cst_1 : f32 to vector<16x1xf32>
    %6 = arith.divf %4, %5 : vector<16x1xf32>
    %cst_2 = arith.constant 9.99999974E-6 : f32
    %7 = vector.broadcast %cst_2 : f32 to vector<16x1xf32>
    %8 = arith.addf %6, %7 : vector<16x1xf32>
    %9 = math.rsqrt %8 : vector<16x1xf32>
    %10 = vector.broadcast %9 : vector<16x1xf32> to vector<16x64xf32>
    %11 = arith.mulf %1, %10 : vector<16x64xf32>
    %c0_3 = arith.constant 0 : index
    %c0_4 = arith.constant 0 : index
    %12 = vector.load %arg2[%c0_3, %c0_4] : memref<1x64xf32, #tpu.memory_space<vmem>>, vector<1x64xf32>
    %13 = vector.broadcast %12 : vector<1x64xf32> to vector<16x64xf32>
    %14 = arith.mulf %11, %13 : vector<16x64xf32>
    %15 = arith.truncf %14 : vector<16x64xf32> to vector<16x64xbf16>
    %c0_5 = arith.constant 0 : index
    %c0_6 = arith.constant 0 : index
    %16 = vector.load %arg3[%c0_5, %c0_6] : memref<16x64xbf16, #tpu.memory_space<vmem>>, vector<16x64xbf16>
    tpu.vector_store %arg3[%c0_5, %c0_6], %15 {strides = array<i32>} : memref<16x64xbf16, #tpu.memory_space<vmem>>, vector<16x64xbf16>,
    return
  }
  func.func @transform_0(%arg0: i32) -> (i32, i32) {
    %c0_i32 = arith.constant 0 : i32
    %c0_i32_0 = arith.constant 0 : i32
    return %arg0, %c0_i32 : i32, i32
  }
  func.func @transform_1(%arg0: i32) -> (i32, i32) {
    %c0_i32 = arith.constant 0 : i32
    %c0_i32_0 = arith.constant 0 : i32
    %c0_i32_1 = arith.constant 0 : i32
    return %c0_i32, %c0_i32_0 : i32, i32
  }
  func.func @transform_2(%arg0: i32) -> (i32, i32) {
    %c0_i32 = arith.constant 0 : i32
    %c0_i32_0 = arith.constant 0 : i32
    return %arg0, %c0_i32 : i32, i32
  }
}

module attributes {stable_mosaic.version = 11 : i64} {
  func.func @_ffn_kernel(%arg0: i32, %arg1: i32, %arg2: memref<16x64xbf16, #tpu.memory_space<vmem>>, %arg3: memref<64x192xbf16, #tpu.memory_space<vmem>>, %arg4: memref<64x192xbf16, #tpu.memory_space<vmem>>, %arg5: memref<192x64xbf16, #tpu.memory_space<vmem>>, %arg6: memref<16x64xbf16, #tpu.memory_space<vmem>>, %arg7: memref<16x64xf32, #tpu.memory_space<vmem>>) attributes {dimension_semantics = [#tpu.dimension_semantics<parallel>, #tpu.dimension_semantics<arbitrary>], iteration_bounds = array<i64: 1, 1>, scalar_prefetch = 0 : i64, scratch_operands = 1 : i64, tpu.core_type = #tpu.core_type<tc>, window_params = [{transform_indices = @transform_0, window_bounds = array<i64: 16, 64>}, {transform_indices = @transform_1, window_bounds = array<i64: 64, 192>}, {transform_indices = @transform_2, window_bounds = array<i64: 64, 192>}, {transform_indices = @transform_3, window_bounds = array<i64: 192, 64>}, {transform_indices = @transform_4, window_bounds = array<i64: 16, 64>}]} {
    %c0_i32 = arith.constant 0 : i32
    %0 = arith.cmpi eq, %arg1, %c0_i32 : i32
    %1 = arith.extui %0 : i1 to i32
    %c0_i32_0 = arith.constant 0 : i32
    %2 = arith.cmpi ne, %1, %c0_i32_0 : i32
    scf.if %2 {
      %cst_17 = arith.constant 0.000000e+00 : f32
      %24 = vector.broadcast %cst_17 : f32 to vector<16x64xf32>
      %c0_18 = arith.constant 0 : index
      %c0_19 = arith.constant 0 : index
      %25 = vector.load %arg7[%c0_18, %c0_19] : memref<16x64xf32, #tpu.memory_space<vmem>>, vector<16x64xf32>
      tpu.vector_store %arg7[%c0_18, %c0_19], %24 {strides = array<i32>} : memref<16x64xf32, #tpu.memory_space<vmem>>, vector<16x64xf32>,
    } else {
    }
    %c0 = arith.constant 0 : index
    %c0_1 = arith.constant 0 : index
    %3 = vector.load %arg2[%c0, %c0_1] : memref<16x64xbf16, #tpu.memory_space<vmem>>, vector<16x64xbf16>
    %c0_2 = arith.constant 0 : index
    %c0_3 = arith.constant 0 : index
    %4 = vector.load %arg3[%c0_2, %c0_3] : memref<64x192xbf16, #tpu.memory_space<vmem>>, vector<64x192xbf16>
    %cst = arith.constant dense<0.000000e+00> : vector<16x192xf32>
    %5 = tpu.matmul %3, %4, %cst {dimension_numbers = #tpu.dot_dimension_numbers<[1], [0], [0], [1], [0, 0, 1, 1], [], []>} : vector<16x64xbf16>, vector<64x192xbf16>, vector<16x192xf32> -> vector<16x192xf32>
    %c0_4 = arith.constant 0 : index
    %c0_5 = arith.constant 0 : index
    %6 = vector.load %arg4[%c0_4, %c0_5] : memref<64x192xbf16, #tpu.memory_space<vmem>>, vector<64x192xbf16>
    %cst_6 = arith.constant dense<0.000000e+00> : vector<16x192xf32>
    %7 = tpu.matmul %3, %6, %cst_6 {dimension_numbers = #tpu.dot_dimension_numbers<[1], [0], [0], [1], [0, 0, 1, 1], [], []>} : vector<16x64xbf16>, vector<64x192xbf16>, vector<16x192xf32> -> vector<16x192xf32>
    %8 = arith.negf %5 : vector<16x192xf32>
    %9 = math.exp %8 : vector<16x192xf32>
    %cst_7 = arith.constant 1.000000e+00 : f32
    %10 = vector.broadcast %cst_7 : f32 to vector<16x192xf32>
    %11 = arith.addf %10, %9 : vector<16x192xf32>
    %12 = arith.divf %10, %11 : vector<16x192xf32>
    %13 = arith.mulf %5, %12 : vector<16x192xf32>
    %14 = arith.mulf %13, %7 : vector<16x192xf32>
    %c0_8 = arith.constant 0 : index
    %c0_9 = arith.constant 0 : index
    %15 = vector.load %arg7[%c0_8, %c0_9] : memref<16x64xf32, #tpu.memory_space<vmem>>, vector<16x64xf32>
    %16 = arith.truncf %14 : vector<16x192xf32> to vector<16x192xbf16>
    %c0_10 = arith.constant 0 : index
    %c0_11 = arith.constant 0 : index
    %17 = vector.load %arg5[%c0_10, %c0_11] : memref<192x64xbf16, #tpu.memory_space<vmem>>, vector<192x64xbf16>
    %cst_12 = arith.constant dense<0.000000e+00> : vector<16x64xf32>
    %18 = tpu.matmul %16, %17, %cst_12 {dimension_numbers = #tpu.dot_dimension_numbers<[1], [0], [0], [1], [0, 0, 1, 1], [], []>} : vector<16x192xbf16>, vector<192x64xbf16>, vector<16x64xf32> -> vector<16x64xf32>
    %19 = arith.addf %15, %18 : vector<16x64xf32>
    %c0_13 = arith.constant 0 : index
    %c0_14 = arith.constant 0 : index
    %20 = vector.load %arg7[%c0_13, %c0_14] : memref<16x64xf32, #tpu.memory_space<vmem>>, vector<16x64xf32>
    tpu.vector_store %arg7[%c0_13, %c0_14], %19 {strides = array<i32>} : memref<16x64xf32, #tpu.memory_space<vmem>>, vector<16x64xf32>,
    %c0_i32_15 = arith.constant 0 : i32
    %21 = arith.cmpi eq, %arg1, %c0_i32_15 : i32
    %22 = arith.extui %21 : i1 to i32
    %c0_i32_16 = arith.constant 0 : i32
    %23 = arith.cmpi ne, %22, %c0_i32_16 : i32
    scf.if %23 {
      %c0_17 = arith.constant 0 : index
      %c0_18 = arith.constant 0 : index
      %24 = vector.load %arg7[%c0_17, %c0_18] : memref<16x64xf32, #tpu.memory_space<vmem>>, vector<16x64xf32>
      %25 = arith.truncf %24 : vector<16x64xf32> to vector<16x64xbf16>
      %c0_19 = arith.constant 0 : index
      %c0_20 = arith.constant 0 : index
      %26 = vector.load %arg6[%c0_19, %c0_20] : memref<16x64xbf16, #tpu.memory_space<vmem>>, vector<16x64xbf16>
      tpu.vector_store %arg6[%c0_19, %c0_20], %25 {strides = array<i32>} : memref<16x64xbf16, #tpu.memory_space<vmem>>, vector<16x64xbf16>,
    } else {
    }
    return
  }
  func.func @transform_0(%arg0: i32, %arg1: i32) -> (i32, i32) {
    %c0_i32 = arith.constant 0 : i32
    %c0_i32_0 = arith.constant 0 : i32
    return %arg0, %c0_i32 : i32, i32
  }
  func.func @transform_1(%arg0: i32, %arg1: i32) -> (i32, i32) {
    %c0_i32 = arith.constant 0 : i32
    %c0_i32_0 = arith.constant 0 : i32
    return %c0_i32, %arg1 : i32, i32
  }
  func.func @transform_2(%arg0: i32, %arg1: i32) -> (i32, i32) {
    %c0_i32 = arith.constant 0 : i32
    %c0_i32_0 = arith.constant 0 : i32
    return %c0_i32, %arg1 : i32, i32
  }
  func.func @transform_3(%arg0: i32, %arg1: i32) -> (i32, i32) {
    %c0_i32 = arith.constant 0 : i32
    %c0_i32_0 = arith.constant 0 : i32
    return %arg1, %c0_i32 : i32, i32
  }
  func.func @transform_4(%arg0: i32, %arg1: i32) -> (i32, i32) {
    %c0_i32 = arith.constant 0 : i32
    %c0_i32_0 = arith.constant 0 : i32
    return %arg0, %c0_i32 : i32, i32
  }
}

module attributes {stable_mosaic.version = 11 : i64} {
  func.func @_flash_attn_kernel(%arg0: i32, %arg1: i32, %arg2: i32, %arg3: memref<1x8x16xbf16, #tpu.memory_space<vmem>>, %arg4: memref<1x8x16xbf16, #tpu.memory_space<vmem>>, %arg5: memref<1x8x16xbf16, #tpu.memory_space<vmem>>, %arg6: memref<1x8x16xbf16, #tpu.memory_space<vmem>>, %arg7: memref<8x1xf32, #tpu.memory_space<vmem>>, %arg8: memref<8x1xf32, #tpu.memory_space<vmem>>, %arg9: memref<8x16xf32, #tpu.memory_space<vmem>>) attributes {dimension_semantics = [#tpu.dimension_semantics<parallel>, #tpu.dimension_semantics<parallel>, #tpu.dimension_semantics<arbitrary>], iteration_bounds = array<i64: 8, 1, 1>, scalar_prefetch = 0 : i64, scratch_operands = 3 : i64, tpu.core_type = #tpu.core_type<tc>, window_params = [{transform_indices = @transform_0, window_bounds = array<i64: 1, 8, 16>}, {transform_indices = @transform_1, window_bounds = array<i64: 1, 8, 16>}, {transform_indices = @transform_2, window_bounds = array<i64: 1, 8, 16>}, {transform_indices = @transform_3, window_bounds = array<i64: 1, 8, 16>}]} {
    %c0_i32 = arith.constant 0 : i32
    %0 = arith.cmpi eq, %arg2, %c0_i32 : i32
    %1 = arith.extui %0 : i1 to i32
    %c0_i32_0 = arith.constant 0 : i32
    %2 = arith.cmpi ne, %1, %c0_i32_0 : i32
    scf.if %2 {
      %cst = arith.constant 0xFF800000 : f32
      %21 = vector.broadcast %cst : f32 to vector<8x1xf32>
      %c0 = arith.constant 0 : index
      %c0_10 = arith.constant 0 : index
      %22 = vector.load %arg7[%c0, %c0_10] : memref<8x1xf32, #tpu.memory_space<vmem>>, vector<8x1xf32>
      tpu.vector_store %arg7[%c0, %c0_10], %21 {strides = array<i32>} : memref<8x1xf32, #tpu.memory_space<vmem>>, vector<8x1xf32>,
      %cst_11 = arith.constant 0.000000e+00 : f32
      %23 = vector.broadcast %cst_11 : f32 to vector<8x1xf32>
      %c0_12 = arith.constant 0 : index
      %c0_13 = arith.constant 0 : index
      %24 = vector.load %arg8[%c0_12, %c0_13] : memref<8x1xf32, #tpu.memory_space<vmem>>, vector<8x1xf32>
      tpu.vector_store %arg8[%c0_12, %c0_13], %23 {strides = array<i32>} : memref<8x1xf32, #tpu.memory_space<vmem>>, vector<8x1xf32>,
      %cst_14 = arith.constant 0.000000e+00 : f32
      %25 = vector.broadcast %cst_14 : f32 to vector<8x16xf32>
      %c0_15 = arith.constant 0 : index
      %c0_16 = arith.constant 0 : index
      %26 = vector.load %arg9[%c0_15, %c0_16] : memref<8x16xf32, #tpu.memory_space<vmem>>, vector<8x16xf32>
      tpu.vector_store %arg9[%c0_15, %c0_16], %25 {strides = array<i32>} : memref<8x16xf32, #tpu.memory_space<vmem>>, vector<8x16xf32>,
    } else {
    }
    %c8_i32 = arith.constant 8 : i32
    %3 = arith.muli %arg1, %c8_i32 : i32
    %c0_i32_1 = arith.constant 0 : i32
    %4 = arith.addi %c0_i32_1, %3 : i32
    %c8_i32_2 = arith.constant 8 : i32
    %5 = arith.addi %4, %c8_i32_2 : i32
    %c1_i32 = arith.constant 1 : i32
    %6 = arith.subi %5, %c1_i32 : i32
    %c8_i32_3 = arith.constant 8 : i32
    %7 = arith.muli %arg2, %c8_i32_3 : i32
    %c8_i32_4 = arith.constant 8 : i32
    %8 = arith.addi %7, %c8_i32_4 : i32
    %c1_i32_5 = arith.constant 1 : i32
    %9 = arith.subi %8, %c1_i32_5 : i32
    %10 = arith.cmpi sle, %9, %4 : i32
    %11 = arith.extui %10 : i1 to i32
    %c0_i32_6 = arith.constant 0 : i32
    %12 = arith.cmpi ne, %11, %c0_i32_6 : i32
    scf.if %12 {
      %c0 = arith.constant 0 : index
      %c0_10 = arith.constant 0 : index
      %c0_11 = arith.constant 0 : index
      %21 = vector.load %arg3[%c0, %c0_10, %c0_11] : memref<1x8x16xbf16, #tpu.memory_space<vmem>>, vector<1x8x16xbf16>
      %22 = vector.shape_cast %21 : vector<1x8x16xbf16> to vector<8x16xbf16>
      %23 = arith.extf %22 : vector<8x16xbf16> to vector<8x16xf32>
      %cst = arith.constant 2.500000e-01 : f32
      %24 = vector.broadcast %cst : f32 to vector<8x16xf32>
      %25 = arith.mulf %23, %24 : vector<8x16xf32>
      %26 = arith.truncf %25 : vector<8x16xf32> to vector<8x16xbf16>
      %c0_12 = arith.constant 0 : index
      %c0_13 = arith.constant 0 : index
      %c0_14 = arith.constant 0 : index
      %27 = vector.load %arg4[%c0_12, %c0_13, %c0_14] : memref<1x8x16xbf16, #tpu.memory_space<vmem>>, vector<1x8x16xbf16>
      %28 = vector.shape_cast %27 : vector<1x8x16xbf16> to vector<8x16xbf16>
      %c0_15 = arith.constant 0 : index
      %c0_16 = arith.constant 0 : index
      %c0_17 = arith.constant 0 : index
      %29 = vector.load %arg5[%c0_15, %c0_16, %c0_17] : memref<1x8x16xbf16, #tpu.memory_space<vmem>>, vector<1x8x16xbf16>
      %30 = vector.shape_cast %29 : vector<1x8x16xbf16> to vector<8x16xbf16>
      %cst_18 = arith.constant dense<0.000000e+00> : vector<8x8xf32>
      %31 = tpu.matmul %26, %28, %cst_18 {dimension_numbers = #tpu.dot_dimension_numbers<[1], [1], [0], [0], [0, 0, 1, 0], [], []>} : vector<8x16xbf16>, vector<8x16xbf16>, vector<8x8xf32> -> vector<8x8xf32>
      %c0_19 = arith.constant 0 : index
      %c0_20 = arith.constant 0 : index
      %32 = vector.load %arg7[%c0_19, %c0_20] : memref<8x1xf32, #tpu.memory_space<vmem>>, vector<8x1xf32>
      %cst_21 = arith.constant dense<0xFF800000> : vector<8xf32>
      %33 = vector.multi_reduction <maximumf>, %31, %cst_21 [1] : vector<8x8xf32> to vector<8xf32>
      %34 = vector.shape_cast %33 : vector<8xf32> to vector<8x1xf32>
      %35 = arith.maximumf %32, %34 : vector<8x1xf32>
      %36 = arith.subf %32, %35 : vector<8x1xf32>
      %37 = math.exp %36 : vector<8x1xf32>
      %38 = vector.broadcast %35 : vector<8x1xf32> to vector<8x8xf32>
      %39 = arith.subf %31, %38 : vector<8x8xf32>
      %40 = math.exp %39 : vector<8x8xf32>
      %c0_22 = arith.constant 0 : index
      %c0_23 = arith.constant 0 : index
      %41 = vector.load %arg8[%c0_22, %c0_23] : memref<8x1xf32, #tpu.memory_space<vmem>>, vector<8x1xf32>
      %42 = arith.mulf %37, %41 : vector<8x1xf32>
      %cst_24 = arith.constant dense<0.000000e+00> : vector<8xf32>
      %43 = vector.multi_reduction <add>, %40, %cst_24 [1] : vector<8x8xf32> to vector<8xf32>
      %44 = vector.shape_cast %43 : vector<8xf32> to vector<8x1xf32>
      %45 = arith.addf %42, %44 : vector<8x1xf32>
      %c0_25 = arith.constant 0 : index
      %c0_26 = arith.constant 0 : index
      %46 = vector.load %arg8[%c0_25, %c0_26] : memref<8x1xf32, #tpu.memory_space<vmem>>, vector<8x1xf32>
      tpu.vector_store %arg8[%c0_25, %c0_26], %45 {strides = array<i32>} : memref<8x1xf32, #tpu.memory_space<vmem>>, vector<8x1xf32>,
      %c0_27 = arith.constant 0 : index
      %c0_28 = arith.constant 0 : index
      %47 = vector.load %arg9[%c0_27, %c0_28] : memref<8x16xf32, #tpu.memory_space<vmem>>, vector<8x16xf32>
      %48 = vector.broadcast %37 : vector<8x1xf32> to vector<8x16xf32>
      %49 = arith.mulf %48, %47 : vector<8x16xf32>
      %50 = arith.truncf %40 : vector<8x8xf32> to vector<8x8xbf16>
      %cst_29 = arith.constant dense<0.000000e+00> : vector<8x16xf32>
      %51 = tpu.matmul %50, %30, %cst_29 {dimension_numbers = #tpu.dot_dimension_numbers<[1], [0], [0], [1], [0, 0, 1, 1], [], []>} : vector<8x8xbf16>, vector<8x16xbf16>, vector<8x16xf32> -> vector<8x16xf32>
      %52 = arith.addf %49, %51 : vector<8x16xf32>
      %c0_30 = arith.constant 0 : index
      %c0_31 = arith.constant 0 : index
      %53 = vector.load %arg9[%c0_30, %c0_31] : memref<8x16xf32, #tpu.memory_space<vmem>>, vector<8x16xf32>
      tpu.vector_store %arg9[%c0_30, %c0_31], %52 {strides = array<i32>} : memref<8x16xf32, #tpu.memory_space<vmem>>, vector<8x16xf32>,
      %c0_32 = arith.constant 0 : index
      %c0_33 = arith.constant 0 : index
      %54 = vector.load %arg7[%c0_32, %c0_33] : memref<8x1xf32, #tpu.memory_space<vmem>>, vector<8x1xf32>
      tpu.vector_store %arg7[%c0_32, %c0_33], %35 {strides = array<i32>} : memref<8x1xf32, #tpu.memory_space<vmem>>, vector<8x1xf32>,
    } else {
    }
    %13 = arith.cmpi sle, %7, %6 : i32
    %14 = arith.cmpi sgt, %9, %4 : i32
    %15 = arith.andi %13, %14 : i1
    %16 = arith.extui %15 : i1 to i32
    %c0_i32_7 = arith.constant 0 : i32
    %17 = arith.cmpi ne, %16, %c0_i32_7 : i32
    scf.if %17 {
      %c0 = arith.constant 0 : index
      %c0_10 = arith.constant 0 : index
      %c0_11 = arith.constant 0 : index
      %21 = vector.load %arg3[%c0, %c0_10, %c0_11] : memref<1x8x16xbf16, #tpu.memory_space<vmem>>, vector<1x8x16xbf16>
      %22 = vector.shape_cast %21 : vector<1x8x16xbf16> to vector<8x16xbf16>
      %23 = arith.extf %22 : vector<8x16xbf16> to vector<8x16xf32>
      %cst = arith.constant 2.500000e-01 : f32
      %24 = vector.broadcast %cst : f32 to vector<8x16xf32>
      %25 = arith.mulf %23, %24 : vector<8x16xf32>
      %26 = arith.truncf %25 : vector<8x16xf32> to vector<8x16xbf16>
      %c0_12 = arith.constant 0 : index
      %c0_13 = arith.constant 0 : index
      %c0_14 = arith.constant 0 : index
      %27 = vector.load %arg4[%c0_12, %c0_13, %c0_14] : memref<1x8x16xbf16, #tpu.memory_space<vmem>>, vector<1x8x16xbf16>
      %28 = vector.shape_cast %27 : vector<1x8x16xbf16> to vector<8x16xbf16>
      %c0_15 = arith.constant 0 : index
      %c0_16 = arith.constant 0 : index
      %c0_17 = arith.constant 0 : index
      %29 = vector.load %arg5[%c0_15, %c0_16, %c0_17] : memref<1x8x16xbf16, #tpu.memory_space<vmem>>, vector<1x8x16xbf16>
      %30 = vector.shape_cast %29 : vector<1x8x16xbf16> to vector<8x16xbf16>
      %cst_18 = arith.constant dense<0.000000e+00> : vector<8x8xf32>
      %31 = tpu.matmul %26, %28, %cst_18 {dimension_numbers = #tpu.dot_dimension_numbers<[1], [1], [0], [0], [0, 0, 1, 0], [], []>} : vector<8x16xbf16>, vector<8x16xbf16>, vector<8x8xf32> -> vector<8x8xf32>
      %32 = tpu.iota {dimensions = array<i32: 0>} : vector<8x8xi32>
      %33 = vector.broadcast %4 : i32 to vector<8x8xi32>
      %34 = arith.addi %33, %32 : vector<8x8xi32>
      %35 = tpu.iota {dimensions = array<i32: 1>} : vector<8x8xi32>
      %36 = vector.broadcast %7 : i32 to vector<8x8xi32>
      %37 = arith.addi %36, %35 : vector<8x8xi32>
      %38 = arith.cmpi sle, %37, %34 : vector<8x8xi32>
      %cst_19 = arith.constant -1.000000e+30 : f32
      %39 = vector.broadcast %cst_19 : f32 to vector<8x8xf32>
      %40 = arith.select %38, %31, %39 : vector<8x8xi1>, vector<8x8xf32>
      %c0_20 = arith.constant 0 : index
      %c0_21 = arith.constant 0 : index
      %41 = vector.load %arg7[%c0_20, %c0_21] : memref<8x1xf32, #tpu.memory_space<vmem>>, vector<8x1xf32>
      %cst_22 = arith.constant dense<0xFF800000> : vector<8xf32>
      %42 = vector.multi_reduction <maximumf>, %40, %cst_22 [1] : vector<8x8xf32> to vector<8xf32>
      %43 = vector.shape_cast %42 : vector<8xf32> to vector<8x1xf32>
      %44 = arith.maximumf %41, %43 : vector<8x1xf32>
      %45 = arith.subf %41, %44 : vector<8x1xf32>
      %46 = math.exp %45 : vector<8x1xf32>
      %47 = vector.broadcast %44 : vector<8x1xf32> to vector<8x8xf32>
      %48 = arith.subf %40, %47 : vector<8x8xf32>
      %49 = math.exp %48 : vector<8x8xf32>
      %c0_23 = arith.constant 0 : index
      %c0_24 = arith.constant 0 : index
      %50 = vector.load %arg8[%c0_23, %c0_24] : memref<8x1xf32, #tpu.memory_space<vmem>>, vector<8x1xf32>
      %51 = arith.mulf %46, %50 : vector<8x1xf32>
      %cst_25 = arith.constant dense<0.000000e+00> : vector<8xf32>
      %52 = vector.multi_reduction <add>, %49, %cst_25 [1] : vector<8x8xf32> to vector<8xf32>
      %53 = vector.shape_cast %52 : vector<8xf32> to vector<8x1xf32>
      %54 = arith.addf %51, %53 : vector<8x1xf32>
      %c0_26 = arith.constant 0 : index
      %c0_27 = arith.constant 0 : index
      %55 = vector.load %arg8[%c0_26, %c0_27] : memref<8x1xf32, #tpu.memory_space<vmem>>, vector<8x1xf32>
      tpu.vector_store %arg8[%c0_26, %c0_27], %54 {strides = array<i32>} : memref<8x1xf32, #tpu.memory_space<vmem>>, vector<8x1xf32>,
      %c0_28 = arith.constant 0 : index
      %c0_29 = arith.constant 0 : index
      %56 = vector.load %arg9[%c0_28, %c0_29] : memref<8x16xf32, #tpu.memory_space<vmem>>, vector<8x16xf32>
      %57 = vector.broadcast %46 : vector<8x1xf32> to vector<8x16xf32>
      %58 = arith.mulf %57, %56 : vector<8x16xf32>
      %59 = arith.truncf %49 : vector<8x8xf32> to vector<8x8xbf16>
      %cst_30 = arith.constant dense<0.000000e+00> : vector<8x16xf32>
      %60 = tpu.matmul %59, %30, %cst_30 {dimension_numbers = #tpu.dot_dimension_numbers<[1], [0], [0], [1], [0, 0, 1, 1], [], []>} : vector<8x8xbf16>, vector<8x16xbf16>, vector<8x16xf32> -> vector<8x16xf32>
      %61 = arith.addf %58, %60 : vector<8x16xf32>
      %c0_31 = arith.constant 0 : index
      %c0_32 = arith.constant 0 : index
      %62 = vector.load %arg9[%c0_31, %c0_32] : memref<8x16xf32, #tpu.memory_space<vmem>>, vector<8x16xf32>
      tpu.vector_store %arg9[%c0_31, %c0_32], %61 {strides = array<i32>} : memref<8x16xf32, #tpu.memory_space<vmem>>, vector<8x16xf32>,
      %c0_33 = arith.constant 0 : index
      %c0_34 = arith.constant 0 : index
      %63 = vector.load %arg7[%c0_33, %c0_34] : memref<8x1xf32, #tpu.memory_space<vmem>>, vector<8x1xf32>
      tpu.vector_store %arg7[%c0_33, %c0_34], %44 {strides = array<i32>} : memref<8x1xf32, #tpu.memory_space<vmem>>, vector<8x1xf32>,
    } else {
    }
    %c0_i32_8 = arith.constant 0 : i32
    %18 = arith.cmpi eq, %arg2, %c0_i32_8 : i32
    %19 = arith.extui %18 : i1 to i32
    %c0_i32_9 = arith.constant 0 : i32
    %20 = arith.cmpi ne, %19, %c0_i32_9 : i32
    scf.if %20 {
      %c0 = arith.constant 0 : index
      %c0_10 = arith.constant 0 : index
      %21 = vector.load %arg9[%c0, %c0_10] : memref<8x16xf32, #tpu.memory_space<vmem>>, vector<8x16xf32>
      %c0_11 = arith.constant 0 : index
      %c0_12 = arith.constant 0 : index
      %22 = vector.load %arg8[%c0_11, %c0_12] : memref<8x1xf32, #tpu.memory_space<vmem>>, vector<8x1xf32>
      %23 = tpu.reciprocal %22 {approx = true} : vector<8x1xf32> -> vector<8x1xf32>
      %24 = vector.broadcast %23 : vector<8x1xf32> to vector<8x16xf32>
      %25 = arith.mulf %21, %24 : vector<8x16xf32>
      %26 = arith.truncf %25 : vector<8x16xf32> to vector<8x16xbf16>
      %c0_13 = arith.constant 0 : index
      %c0_14 = arith.constant 0 : index
      %c0_15 = arith.constant 0 : index
      %27 = vector.load %arg6[%c0_13, %c0_14, %c0_15] : memref<1x8x16xbf16, #tpu.memory_space<vmem>>, vector<1x8x16xbf16>
      %28 = vector.shape_cast %27 : vector<1x8x16xbf16> to vector<8x16xbf16>
      %29 = vector.shape_cast %26 : vector<8x16xbf16> to vector<1x8x16xbf16>
      tpu.vector_store %arg6[%c0_13, %c0_14, %c0_15], %29 {strides = array<i32>} : memref<1x8x16xbf16, #tpu.memory_space<vmem>>, vector<1x8x16xbf16>,
    } else {
    }
    return
  }
  func.func @transform_0(%arg0: i32, %arg1: i32, %arg2: i32) -> (i32, i32, i32) {
    %c0_i32 = arith.constant 0 : i32
    %c0_i32_0 = arith.constant 0 : i32
    return %arg0, %arg1, %c0_i32 : i32, i32, i32
  }
  func.func @transform_1(%arg0: i32, %arg1: i32, %arg2: i32) -> (i32, i32, i32) {
    %c0_i32 = arith.constant 0 : i32
    %c0_i32_0 = arith.constant 0 : i32
    return %arg0, %arg2, %c0_i32 : i32, i32, i32
  }
  func.func @transform_2(%arg0: i32, %arg1: i32, %arg2: i32) -> (i32, i32, i32) {
    %c0_i32 = arith.constant 0 : i32
    %c0_i32_0 = arith.constant 0 : i32
    return %arg0, %arg2, %c0_i32 : i32, i32, i32
  }
  func.func @transform_3(%arg0: i32, %arg1: i32, %arg2: i32) -> (i32, i32, i32) {
    %c0_i32 = arith.constant 0 : i32
    %c0_i32_0 = arith.constant 0 : i32
    return %arg0, %arg1, %c0_i32 : i32, i32, i32
  }
}

module attributes {stable_mosaic.version = 11 : i64} {
  func.func @_matmul_kernel(%arg0: i32, %arg1: i32, %arg2: i32, %arg3: memref<16x64xbf16, #tpu.memory_space<vmem>>, %arg4: memref<64x64xbf16, #tpu.memory_space<vmem>>, %arg5: memref<16x64xbf16, #tpu.memory_space<vmem>>, %arg6: memref<16x64xf32, #tpu.memory_space<vmem>>) attributes {dimension_semantics = [#tpu.dimension_semantics<parallel>, #tpu.dimension_semantics<parallel>, #tpu.dimension_semantics<arbitrary>], iteration_bounds = array<i64: 1, 1, 1>, scalar_prefetch = 0 : i64, scratch_operands = 1 : i64, tpu.core_type = #tpu.core_type<tc>, window_params = [{transform_indices = @transform_0, window_bounds = array<i64: 16, 64>}, {transform_indices = @transform_1, window_bounds = array<i64: 64, 64>}, {transform_indices = @transform_2, window_bounds = array<i64: 16, 64>}]} {
    %c0_i32 = arith.constant 0 : i32
    %0 = arith.cmpi eq, %arg2, %c0_i32 : i32
    %1 = arith.extui %0 : i1 to i32
    %c0_i32_0 = arith.constant 0 : i32
    %2 = arith.cmpi ne, %1, %c0_i32_0 : i32
    scf.if %2 {
      %cst_10 = arith.constant 0.000000e+00 : f32
      %12 = vector.broadcast %cst_10 : f32 to vector<16x64xf32>
      %c0_11 = arith.constant 0 : index
      %c0_12 = arith.constant 0 : index
      %13 = vector.load %arg6[%c0_11, %c0_12] : memref<16x64xf32, #tpu.memory_space<vmem>>, vector<16x64xf32>
      tpu.vector_store %arg6[%c0_11, %c0_12], %12 {strides = array<i32>} : memref<16x64xf32, #tpu.memory_space<vmem>>, vector<16x64xf32>,
    } else {
    }
    %c0 = arith.constant 0 : index
    %c0_1 = arith.constant 0 : index
    %3 = vector.load %arg6[%c0, %c0_1] : memref<16x64xf32, #tpu.memory_space<vmem>>, vector<16x64xf32>
    %c0_2 = arith.constant 0 : index
    %c0_3 = arith.constant 0 : index
    %4 = vector.load %arg3[%c0_2, %c0_3] : memref<16x64xbf16, #tpu.memory_space<vmem>>, vector<16x64xbf16>
    %c0_4 = arith.constant 0 : index
    %c0_5 = arith.constant 0 : index
    %5 = vector.load %arg4[%c0_4, %c0_5] : memref<64x64xbf16, #tpu.memory_space<vmem>>, vector<64x64xbf16>
    %cst = arith.constant dense<0.000000e+00> : vector<16x64xf32>
    %6 = tpu.matmul %4, %5, %cst {dimension_numbers = #tpu.dot_dimension_numbers<[1], [0], [0], [1], [0, 0, 1, 1], [], []>} : vector<16x64xbf16>, vector<64x64xbf16>, vector<16x64xf32> -> vector<16x64xf32>
    %7 = arith.addf %3, %6 : vector<16x64xf32>
    %c0_6 = arith.constant 0 : index
    %c0_7 = arith.constant 0 : index
    %8 = vector.load %arg6[%c0_6, %c0_7] : memref<16x64xf32, #tpu.memory_space<vmem>>, vector<16x64xf32>
    tpu.vector_store %arg6[%c0_6, %c0_7], %7 {strides = array<i32>} : memref<16x64xf32, #tpu.memory_space<vmem>>, vector<16x64xf32>,
    %c0_i32_8 = arith.constant 0 : i32
    %9 = arith.cmpi eq, %arg2, %c0_i32_8 : i32
    %10 = arith.extui %9 : i1 to i32
    %c0_i32_9 = arith.constant 0 : i32
    %11 = arith.cmpi ne, %10, %c0_i32_9 : i32
    scf.if %11 {
      %c0_10 = arith.constant 0 : index
      %c0_11 = arith.constant 0 : index
      %12 = vector.load %arg6[%c0_10, %c0_11] : memref<16x64xf32, #tpu.memory_space<vmem>>, vector<16x64xf32>
      %13 = arith.truncf %12 : vector<16x64xf32> to vector<16x64xbf16>
      %c0_12 = arith.constant 0 : index
      %c0_13 = arith.constant 0 : index
      %14 = vector.load %arg5[%c0_12, %c0_13] : memref<16x64xbf16, #tpu.memory_space<vmem>>, vector<16x64xbf16>
      tpu.vector_store %arg5[%c0_12, %c0_13], %13 {strides = array<i32>} : memref<16x64xbf16, #tpu.memory_space<vmem>>, vector<16x64xbf16>,
    } else {
    }
    return
  }
  func.func @transform_0(%arg0: i32, %arg1: i32, %arg2: i32) -> (i32, i32) {
    %c0_i32 = arith.constant 0 : i32
    return %arg0, %arg2 : i32, i32
  }
  func.func @transform_1(%arg0: i32, %arg1: i32, %arg2: i32) -> (i32, i32) {
    %c0_i32 = arith.constant 0 : i32
    return %arg2, %arg1 : i32, i32
  }
  func.func @transform_2(%arg0: i32, %arg1: i32, %arg2: i32) -> (i32, i32) {
    %c0_i32 = arith.constant 0 : i32
    return %arg0, %arg1 : i32, i32
  }
}

module attributes {stable_mosaic.version = 11 : i64} {
  func.func @_matmul_kernel_f32out(%arg0: i32, %arg1: i32, %arg2: i32, %arg3: memref<16x64xbf16, #tpu.memory_space<vmem>>, %arg4: memref<64x128xbf16, #tpu.memory_space<vmem>>, %arg5: memref<16x128xf32, #tpu.memory_space<vmem>>) attributes {dimension_semantics = [#tpu.dimension_semantics<parallel>, #tpu.dimension_semantics<parallel>, #tpu.dimension_semantics<arbitrary>], iteration_bounds = array<i64: 1, 1, 1>, scalar_prefetch = 0 : i64, scratch_operands = 0 : i64, tpu.core_type = #tpu.core_type<tc>, window_params = [{transform_indices = @transform_0, window_bounds = array<i64: 16, 64>}, {transform_indices = @transform_1, window_bounds = array<i64: 64, 128>}, {transform_indices = @transform_2, window_bounds = array<i64: 16, 128>}]} {
    %c0_i32 = arith.constant 0 : i32
    %0 = arith.cmpi eq, %arg2, %c0_i32 : i32
    %1 = arith.extui %0 : i1 to i32
    %c0_i32_0 = arith.constant 0 : i32
    %2 = arith.cmpi ne, %1, %c0_i32_0 : i32
    scf.if %2 {
      %cst_8 = arith.constant 0.000000e+00 : f32
      %9 = vector.broadcast %cst_8 : f32 to vector<16x128xf32>
      %c0_9 = arith.constant 0 : index
      %c0_10 = arith.constant 0 : index
      %10 = vector.load %arg5[%c0_9, %c0_10] : memref<16x128xf32, #tpu.memory_space<vmem>>, vector<16x128xf32>
      tpu.vector_store %arg5[%c0_9, %c0_10], %9 {strides = array<i32>} : memref<16x128xf32, #tpu.memory_space<vmem>>, vector<16x128xf32>,
    } else {
    }
    %c0 = arith.constant 0 : index
    %c0_1 = arith.constant 0 : index
    %3 = vector.load %arg5[%c0, %c0_1] : memref<16x128xf32, #tpu.memory_space<vmem>>, vector<16x128xf32>
    %c0_2 = arith.constant 0 : index
    %c0_3 = arith.constant 0 : index
    %4 = vector.load %arg3[%c0_2, %c0_3] : memref<16x64xbf16, #tpu.memory_space<vmem>>, vector<16x64xbf16>
    %c0_4 = arith.constant 0 : index
    %c0_5 = arith.constant 0 : index
    %5 = vector.load %arg4[%c0_4, %c0_5] : memref<64x128xbf16, #tpu.memory_space<vmem>>, vector<64x128xbf16>
    %cst = arith.constant dense<0.000000e+00> : vector<16x128xf32>
    %6 = tpu.matmul %4, %5, %cst {dimension_numbers = #tpu.dot_dimension_numbers<[1], [0], [0], [1], [0, 0, 1, 1], [], []>} : vector<16x64xbf16>, vector<64x128xbf16>, vector<16x128xf32> -> vector<16x128xf32>
    %7 = arith.addf %3, %6 : vector<16x128xf32>
    %c0_6 = arith.constant 0 : index
    %c0_7 = arith.constant 0 : index
    %8 = vector.load %arg5[%c0_6, %c0_7] : memref<16x128xf32, #tpu.memory_space<vmem>>, vector<16x128xf32>
    tpu.vector_store %arg5[%c0_6, %c0_7], %7 {strides = array<i32>} : memref<16x128xf32, #tpu.memory_space<vmem>>, vector<16x128xf32>,
    return
  }
  func.func @transform_0(%arg0: i32, %arg1: i32, %arg2: i32) -> (i32, i32) {
    %c0_i32 = arith.constant 0 : i32
    return %arg0, %arg2 : i32, i32
  }
  func.func @transform_1(%arg0: i32, %arg1: i32, %arg2: i32) -> (i32, i32) {
    %c0_i32 = arith.constant 0 : i32
    return %arg2, %arg1 : i32, i32
  }
  func.func @transform_2(%arg0: i32, %arg1: i32, %arg2: i32) -> (i32, i32) {
    %c0_i32 = arith.constant 0 : i32
    return %arg0, %arg1 : i32, i32
  }
}

</mosaic_0001>

<llo_original>
// kernel: transformer_forward.15
$region0: #{transformer_forward.15}
  #allocation0 [shape = 'u32[]', space=smem, size = 0x4, offset = 0x4, fixed_abs, tag = 'smem constant byte address 0x4 - core index']
  #allocation1 [shape = 'u32[144,128]{1,0:T(1,128)}', space=vmem, size = 0x12000, scoped, tag = 'internal scratch']
  #allocation2 [shape = 'f32[16,192]{1,0:T(8,128)}', space=vmem, size = 0x4000, scoped, tag = 'scratch operand']
  %s0 = inlined_call_operand.vmem [shape: bf16[16,64], index: 0, kind: input, shape index: {}]
  %s1 = inlined_call_operand.vmem [shape: bf16[64,192], index: 1, kind: input, shape index: {}]
  %s2 = inlined_call_operand.vmem [shape: bf16[16,192], index: 2, kind: output, shape index: {}]
  %s3 = sld [smem:[#allocation0]]
  $region26: #{transformer_forward.15} parent=0
    _
  %s5 = ssub.s32 1, %s3
  %s6 = scalar_select 0, %s5, %s3
  // Predicated region
  $region2: #{transformer_forward.15} parent=0 // pred_check
    _
  $region3: #{transformer_forward.15} parent=0 // pred_check_branch
    %8 = sbr.rel (0) target = $region5
  $region4: #{transformer_forward.15} parent=0 // pred_region
    _
  $region5: #{transformer_forward.15} parent=0 // pred_fallthru
    _
  // Predicated region
  $region6: #{transformer_forward.15} parent=0 // pred_check
    _
  $region7: #{transformer_forward.15} parent=0 // pred_check_branch
    %10 = sbr.rel (0) target = $region9
  $region8: #{transformer_forward.15} parent=0 // pred_region
    _
  $region9: #{transformer_forward.15} parent=0 // pred_fallthru
    _
  %p12 = scmp.eq.s32.totalorder 0, 0
  // Predicated region
  $region10: #{transformer_forward.15} parent=0 // pred_check
    %p13 = pneg %p12
  $region11: #{transformer_forward.15} parent=0 // pred_check_branch
    %15 = sbr.rel (%p13) target = $region13
  $region12: #{transformer_forward.15} parent=0 // pred_region
    %16 = vst [vmem:[#allocation2] sm:$0xff] 0.0
    %vm17 = vcmask 523264
    %18 = vst.msk [vmem:[#allocation2 + $0x8] sm:$0xff] %vm17, 0.0
    %19 = vst [vmem:[#allocation2 + $0x10] sm:$0xff] 0.0
    %20 = vst.msk [vmem:[#allocation2 + $0x18] sm:$0xff] %vm17, 0.0
  $region13: #{transformer_forward.15} parent=0 // pred_fallthru
    _
  %v21 = vld [vmem:[#allocation2] sm:$0xff]
  %v22 = vld [vmem:[#allocation2 + $0x8] sm:$0xff]
  %v23 = vld [vmem:[#allocation2 + $0x10] sm:$0xff]
  %v24 = vld [vmem:[#allocation2 + $0x18] sm:$0xff]
  %v25 = vld [vmem:[%s0] sm:$0xf]
  %v26 = vld [vmem:[%s0 + $0x4] sm:$0xf]
  %v27 = vld [vmem:[%s1] sm:$0xff]
  %v28 = vld [vmem:[%s1 + $0x8] sm:$0xff]
  %v29 = vld [vmem:[%s1 + $0x10] sm:$0xff]
  %v30 = vld [vmem:[%s1 + $0x18] sm:$0xff]
  %v31 = vld [vmem:[%s1 + $0x20] sm:$0xff]
  %v32 = vld [vmem:[%s1 + $0x28] sm:$0xff]
  %v33 = vld [vmem:[%s1 + $0x30] sm:$0xff]
  %v34 = vld [vmem:[%s1 + $0x38] sm:$0xff]
  %v37 = vunpack.c.l.b16 %v25
  %v38 = vunpack.c.l.b16 %v26
  %v39 = vpack.c.b16 %v38, %v37
  %v48 = vunpack.c.l.b16 %v27
  %v49 = vunpack.c.h.b16 %v27
  %v50 = vunpack.c.l.b16 %v28
  %v51 = vunpack.c.h.b16 %v28
  %v52 = vunpack.c.l.b16 %v29
  %v53 = vunpack.c.h.b16 %v29
  %v54 = vunpack.c.l.b16 %v30
  %v55 = vunpack.c.h.b16 %v30
  %v56 = vunpack.c.l.b16 %v31
  %v57 = vunpack.c.h.b16 %v31
  %v58 = vunpack.c.l.b16 %v32
  %v59 = vunpack.c.h.b16 %v32
  %v60 = vunpack.c.l.b16 %v33
  %v61 = vunpack.c.h.b16 %v33
  %v62 = vunpack.c.l.b16 %v34
  %v63 = vunpack.c.h.b16 %v34
  %v64 = vpack.c.b16 %v50, %v48
  %v65 = vpack.c.b16 %v51, %v49
  %v66 = vpack.c.b16 %v54, %v52
  %v67 = vpack.c.b16 %v55, %v53
  %v68 = vpack.c.b16 %v58, %v56
  %v69 = vpack.c.b16 %v59, %v57
  %v70 = vpack.c.b16 %v62, %v60
  %v71 = vpack.c.b16 %v63, %v61
  %vm80 = vcmask 523264
  %v82 = vsel %vm80, %v39, 0
  %84 = vmatprep.subr.bf16.mxu0 %v65
  %85 = vmatpush1.bf16.msra.mxu0 %v64
  %86 = vmatprep.subr.bf16.mxu0 %v67
  %87 = vmatpush1.bf16.msra.mxu0 %v66
  %88 = vmatprep.subr.bf16.mxu0 %v69
  %89 = vmatpush1.bf16.msra.mxu0 %v68
  %90 = vmatprep.subr.bf16.mxu0 %v71
  %91 = vmatpush1.bf16.msra.mxu0 %v70
  %92 = vmatprep.subr.bf16.mxu0 0
  %93 = vmatpush1.bf16.msra.mxu0 0
  %94 = vmatprep.subr.bf16.mxu0 0
  %95 = vmatpush1.bf16.msra.mxu0 0
  %96 = vmatprep.subr.bf16.mxu0 0
  %97 = vmatpush1.bf16.msra.mxu0 0
  %98 = vmatprep.subr.bf16.mxu0 0
  %99 = vmatpush1.bf16.msra.mxu0 0
  %100 = vmatprep.subr.bf16.mxu0 0
  %101 = vmatpush1.bf16.msra.mxu0 0
  %102 = vmatprep.subr.bf16.mxu0 0
  %103 = vmatpush1.bf16.msra.mxu0 0
  %104 = vmatprep.subr.bf16.mxu0 0
  %105 = vmatpush1.bf16.msra.mxu0 0
  %106 = vmatprep.subr.bf16.mxu0 0
  %107 = vmatpush1.bf16.msra.mxu0 0
  %108 = vmatprep.subr.bf16.mxu0 0
  %109 = vmatpush1.bf16.msra.mxu0 0
  %110 = vmatprep.subr.bf16.mxu0 0
  %111 = vmatpush1.bf16.msra.mxu0 0
  %112 = vmatprep.subr.bf16.mxu0 0
  %113 = vmatpush1.bf16.msra.mxu0 0
  %114 = vmatprep.subr.bf16.mxu0 0
  %115 = vmatpush1.bf16.msra.mxu0 0
  %116 = vmatprep.mubr.bf16.mxu0 0
  %117 = vmatmul.mubr.bf16.gmra.mrb[0].mxu0 %v82
  %v118 = vpop.f32.mrb[0].mxu0
  %v119 = vadd.f32 0.0, %v118
  %v120 = vpop.f32.mrb[0].mxu0
  %v121 = vadd.f32 0.0, %v120
  %v122 = vpop.f32.mrb[0].mxu0
  %v123 = vadd.f32 0.0, %v122
  %v124 = vpop.f32.mrb[0].mxu0
  %v125 = vadd.f32 0.0, %v124
  %126 = vdwg.mxu0
  %v127 = vadd.f32 %v21, %v119
  %v128 = vadd.f32 %v22, %v121
  %v129 = vadd.f32 %v23, %v123
  %v130 = vadd.f32 %v24, %v125
  %131 = vst [vmem:[#allocation2] sm:$0xff] %v127
  %132 = vst.msk [vmem:[#allocation2 + $0x8] sm:$0xff] %vm80, %v128
  %133 = vst [vmem:[#allocation2 + $0x10] sm:$0xff] %v129
  %134 = vst.msk [vmem:[#allocation2 + $0x18] sm:$0xff] %vm80, %v130
  // Predicated region
  $region14: #{transformer_forward.15} parent=0 // pred_check
    %p135 = pneg %p12
  $region15: #{transformer_forward.15} parent=0 // pred_check_branch
    %137 = sbr.rel (%p135) target = $region17
  $region16: #{transformer_forward.15} parent=0 // pred_region
    %v138 = vld [vmem:[#allocation2] sm:$0xff]
    %v139 = vld [vmem:[#allocation2 + $0x8] sm:$0xff]
    %v140 = vld [vmem:[#allocation2 + $0x10] sm:$0xff]
    %v141 = vld [vmem:[#allocation2 + $0x18] sm:$0xff]
    %v142 = vpack.c.bf16 %v140, %v138
    %v143 = vpack.c.bf16 %v141, %v139
    %v146 = vunpack.c.l.b16 %v142
    %v147 = vunpack.c.l.b16 %v143
    %v148 = vunpack.c.h.b16 %v142
    %v149 = vunpack.c.h.b16 %v143
    %v150 = vpack.c.b16 %v147, %v146
    %v151 = vpack.c.b16 %v149, %v148
    %vm154 = vcmask 1043456
    %vm155 = vcmask 523268
    %vm156 = vmor %vm155, %vm154
    %157 = vst.msk [vmem:[%s2] sm:$0xff] %vm156, %v150
    %158 = vst.msk [vmem:[%s2 + $0x8] sm:$0xff] %vm156, %v151
  $region17: #{transformer_forward.15} parent=0 // pred_fallthru
    _
  // Predicated region
  $region18: #{transformer_forward.15} parent=0 // pred_check
    _
  $region19: #{transformer_forward.15} parent=0 // pred_check_branch
    %160 = sbr.rel (0) target = $region21
  $region20: #{transformer_forward.15} parent=0 // pred_region
    _
  $region21: #{transformer_forward.15} parent=0 // pred_fallthru
    _
  // Predicated region
  $region22: #{transformer_forward.15} parent=0 // pred_check
    _
  $region23: #{transformer_forward.15} parent=0 // pred_check_branch
    %162 = sbr.rel (0) target = $region25
  $region24: #{transformer_forward.15} parent=0 // pred_region
    _
  $region25: #{transformer_forward.15} parent=0 // pred_fallthru
    _

// kernel: transformer_forward.14
$region0: #{transformer_forward.14}
  #allocation0 [shape = 'u32[]', space=smem, size = 0x4, offset = 0x4, fixed_abs, tag = 'smem constant byte address 0x4 - core index']
  #allocation1 [shape = 'u32[144,128]{1,0:T(1,128)}', space=vmem, size = 0x12000, scoped, tag = 'internal scratch']
  %s0 = inlined_call_operand.vmem [shape: bf16[16,64], index: 0, kind: input, shape index: {}]
  %s1 = inlined_call_operand.vmem [shape: f32[1,64], index: 1, kind: input, shape index: {}]
  %s2 = inlined_call_operand.vmem [shape: bf16[16,64], index: 2, kind: output, shape index: {}]
  %s3 = sld [smem:[#allocation0]]
  $region18: #{transformer_forward.14} parent=0
    _
  %s5 = ssub.s32 1, %s3
  %s6 = scalar_select 0, %s5, %s3
  // Predicated region
  $region2: #{transformer_forward.14} parent=0 // pred_check
    _
  $region3: #{transformer_forward.14} parent=0 // pred_check_branch
    %8 = sbr.rel (0) target = $region5
  $region4: #{transformer_forward.14} parent=0 // pred_region
    _
  $region5: #{transformer_forward.14} parent=0 // pred_fallthru
    _
  // Predicated region
  $region6: #{transformer_forward.14} parent=0 // pred_check
    _
  $region7: #{transformer_forward.14} parent=0 // pred_check_branch
    %10 = sbr.rel (0) target = $region9
  $region8: #{transformer_forward.14} parent=0 // pred_region
    _
  $region9: #{transformer_forward.14} parent=0 // pred_fallthru
    _
  %v11 = vld [vmem:[%s0] sm:$0xf]
  %v12 = vld [vmem:[%s0 + $0x4] sm:$0xf]
  %v13 = vunpack.c.l.bf16 %v11
  %v14 = vunpack.c.l.bf16 %v12
  %v15 = vmul.f32 %v13, %v13
  %v16 = vmul.f32 %v14, %v14
  %vm17 = vcmask 523264
  %v18 = vsel %vm17, %v15, 0.0
  %19 = vadd.xlane.f32.xlu0 %v18
  %v20 = vpop.xlane.xlu0 %19
  %v21 = vsel %vm17, %v16, 0.0
  %22 = vadd.xlane.f32.xlu0 %v21
  %v23 = vpop.xlane.xlu0 %22
  %v24 = vrcp.pop 64.0
  %v25 = vmul.f32 %v20, %v24
  %v26 = vmul.f32 %v23, %v24
  %v27 = vadd.f32 %v25, 1e-05
  %v28 = vadd.f32 %v26, 1e-05
  %v29 = vrsqrt.pop %v27
  %v30 = vrsqrt.pop %v28
  %v31 = vmul.f32 %v13, %v29
  %v32 = vmul.f32 %v14, %v30
  %v33 = vld [vmem:[%s1] sm:$0x1]
  %v35 = vlaneseq
  %v36 = vshrl.u32 %v35, 7
  %v37 = vsub.s32 0, %v36
  %v38 = vrot.slane %v33, %v37
  %v40 = vmul.f32 %v31, %v38
  %v41 = vmul.f32 %v32, %v38
  %v42 = vpack.c.bf16 %v41, %v40
  %v44 = vunpack.c.l.b16 %v42
  %v45 = vunpack.c.h.b16 %v42
  %v46 = vpack.c.b16 %v44, %v44
  %v47 = vpack.c.b16 %v45, %v45
  %vm50 = vcmask 519168
  %51 = vst.msk [vmem:[%s2] sm:$0xf] %vm50, %v46
  %52 = vst.msk [vmem:[%s2 + $0x4] sm:$0xf] %vm50, %v47
  // Predicated region
  $region10: #{transformer_forward.14} parent=0 // pred_check
    _
  $region11: #{transformer_forward.14} parent=0 // pred_check_branch
    %54 = sbr.rel (0) target = $region13
  $region12: #{transformer_forward.14} parent=0 // pred_region
    _
  $region13: #{transformer_forward.14} parent=0 // pred_fallthru
    _
  // Predicated region
  $region14: #{transformer_forward.14} parent=0 // pred_check
    _
  $region15: #{transformer_forward.14} parent=0 // pred_check_branch
    %56 = sbr.rel (0) target = $region17
  $region16: #{transformer_forward.14} parent=0 // pred_region
    _
  $region17: #{transformer_forward.14} parent=0 // pred_fallthru
    _

// kernel: transformer_forward.17
$region0: #{transformer_forward.17}
  #allocation0 [shape = 'u32[]', space=smem, size = 0x4, offset = 0x4, fixed_abs, tag = 'smem constant byte address 0x4 - core index']
  #allocation1 [shape = 'u32[144,128]{1,0:T(1,128)}', space=vmem, size = 0x12000, scoped, tag = 'internal scratch']
  #allocation2 [shape = 'f32[16,64]{1,0:T(8,128)}', space=vmem, size = 0x2000, scoped, tag = 'scratch operand']
  %s0 = inlined_call_operand.vmem [shape: bf16[16,64], index: 0, kind: input, shape index: {}]
  %s1 = inlined_call_operand.vmem [shape: bf16[64,64], index: 1, kind: input, shape index: {}]
  %s2 = inlined_call_operand.vmem [shape: bf16[16,64], index: 2, kind: output, shape index: {}]
  %s3 = sld [smem:[#allocation0]]
  $region26: #{transformer_forward.17} parent=0
    _
  %s5 = ssub.s32 1, %s3
  %s6 = scalar_select 0, %s5, %s3
  // Predicated region
  $region2: #{transformer_forward.17} parent=0 // pred_check
    _
  $region3: #{transformer_forward.17} parent=0 // pred_check_branch
    %8 = sbr.rel (0) target = $region5
  $region4: #{transformer_forward.17} parent=0 // pred_region
    _
  $region5: #{transformer_forward.17} parent=0 // pred_fallthru
    _
  // Predicated region
  $region6: #{transformer_forward.17} parent=0 // pred_check
    _
  $region7: #{transformer_forward.17} parent=0 // pred_check_branch
    %10 = sbr.rel (0) target = $region9
  $region8: #{transformer_forward.17} parent=0 // pred_region
    _
  $region9: #{transformer_forward.17} parent=0 // pred_fallthru
    _
  %p12 = scmp.eq.s32.totalorder 0, 0
  // Predicated region
  $region10: #{transformer_forward.17} parent=0 // pred_check
    %p13 = pneg %p12
  $region11: #{transformer_forward.17} parent=0 // pred_check_branch
    %15 = sbr.rel (%p13) target = $region13
  $region12: #{transformer_forward.17} parent=0 // pred_region
    %vm16 = vcmask 523264
    %17 = vst.msk [vmem:[#allocation2] sm:$0xff] %vm16, 0.0
    %18 = vst.msk [vmem:[#allocation2 + $0x8] sm:$0xff] %vm16, 0.0
  $region13: #{transformer_forward.17} parent=0 // pred_fallthru
    _
  %v19 = vld [vmem:[#allocation2] sm:$0xff]
  %v20 = vld [vmem:[#allocation2 + $0x8] sm:$0xff]
  %v21 = vld [vmem:[%s0] sm:$0xf]
  %v22 = vld [vmem:[%s0 + $0x4] sm:$0xf]
  %v23 = vld [vmem:[%s1] sm:$0xf]
  %v24 = vld [vmem:[%s1 + $0x4] sm:$0xf]
  %v25 = vld [vmem:[%s1 + $0x8] sm:$0xf]
  %v26 = vld [vmem:[%s1 + $0xc] sm:$0xf]
  %v27 = vld [vmem:[%s1 + $0x10] sm:$0xf]
  %v28 = vld [vmem:[%s1 + $0x14] sm:$0xf]
  %v29 = vld [vmem:[%s1 + $0x18] sm:$0xf]
  %v30 = vld [vmem:[%s1 + $0x1c] sm:$0xf]
  %v33 = vunpack.c.l.b16 %v21
  %v34 = vunpack.c.l.b16 %v22
  %v35 = vpack.c.b16 %v34, %v33
  %v44 = vunpack.c.l.b16 %v23
  %v45 = vunpack.c.l.b16 %v24
  %v46 = vunpack.c.l.b16 %v25
  %v47 = vunpack.c.l.b16 %v26
  %v48 = vunpack.c.l.b16 %v27
  %v49 = vunpack.c.l.b16 %v28
  %v50 = vunpack.c.l.b16 %v29
  %v51 = vunpack.c.l.b16 %v30
  %v52 = vpack.c.b16 %v45, %v44
  %v53 = vpack.c.b16 %v47, %v46
  %v54 = vpack.c.b16 %v49, %v48
  %v55 = vpack.c.b16 %v51, %v50
  %vm60 = vcmask 523264
  %v62 = vsel %vm60, %v35, 0
  %64 = vmatprep.subr.bf16.mxu0 0
  %65 = vmatpush1.bf16.msra.mxu0 %v52
  %66 = vmatprep.subr.bf16.mxu0 0
  %67 = vmatpush1.bf16.msra.mxu0 %v53
  %68 = vmatprep.subr.bf16.mxu0 0
  %69 = vmatpush1.bf16.msra.mxu0 %v54
  %70 = vmatprep.subr.bf16.mxu0 0
  %71 = vmatpush1.bf16.msra.mxu0 %v55
  %72 = vmatprep.subr.bf16.mxu0 0
  %73 = vmatpush1.bf16.msra.mxu0 0
  %74 = vmatprep.subr.bf16.mxu0 0
  %75 = vmatpush1.bf16.msra.mxu0 0
  %76 = vmatprep.subr.bf16.mxu0 0
  %77 = vmatpush1.bf16.msra.mxu0 0
  %78 = vmatprep.subr.bf16.mxu0 0
  %79 = vmatpush1.bf16.msra.mxu0 0
  %80 = vmatprep.subr.bf16.mxu0 0
  %81 = vmatpush1.bf16.msra.mxu0 0
  %82 = vmatprep.subr.bf16.mxu0 0
  %83 = vmatpush1.bf16.msra.mxu0 0
  %84 = vmatprep.subr.bf16.mxu0 0
  %85 = vmatpush1.bf16.msra.mxu0 0
  %86 = vmatprep.subr.bf16.mxu0 0
  %87 = vmatpush1.bf16.msra.mxu0 0
  %88 = vmatprep.subr.bf16.mxu0 0
  %89 = vmatpush1.bf16.msra.mxu0 0
  %90 = vmatprep.subr.bf16.mxu0 0
  %91 = vmatpush1.bf16.msra.mxu0 0
  %92 = vmatprep.subr.bf16.mxu0 0
  %93 = vmatpush1.bf16.msra.mxu0 0
  %94 = vmatprep.subr.bf16.mxu0 0
  %95 = vmatpush1.bf16.msra.mxu0 0
  %96 = vmatprep.mubr.bf16.mxu0 0
  %97 = vmatmul.mubr.bf16.gmra.mrb[0].mxu0 %v62
  %v98 = vpop.f32.mrb[0].mxu0
  %v99 = vadd.f32 0.0, %v98
  %v100 = vpop.f32.mrb[0].mxu0
  %v101 = vpop.f32.mrb[0].mxu0
  %v102 = vadd.f32 0.0, %v101
  %v103 = vpop.f32.mrb[0].mxu0
  %104 = vdwg.mxu0
  %v105 = vadd.f32 %v19, %v99
  %v106 = vadd.f32 %v20, %v102
  %107 = vst.msk [vmem:[#allocation2] sm:$0xff] %vm60, %v105
  %108 = vst.msk [vmem:[#allocation2 + $0x8] sm:$0xff] %vm60, %v106
  // Predicated region
  $region14: #{transformer_forward.17} parent=0 // pred_check
    %p109 = pneg %p12
  $region15: #{transformer_forward.17} parent=0 // pred_check_branch
    %111 = sbr.rel (%p109) target = $region17
  $region16: #{transformer_forward.17} parent=0 // pred_region
    %v112 = vld [vmem:[#allocation2] sm:$0xff]
    %v113 = vld [vmem:[#allocation2 + $0x8] sm:$0xff]
    %v114 = vpack.c.bf16 %v113, %v112
    %v116 = vunpack.c.l.b16 %v114
    %v117 = vunpack.c.h.b16 %v114
    %v118 = vpack.c.b16 %v116, %v116
    %v119 = vpack.c.b16 %v117, %v117
    %vm122 = vcmask 519168
    %123 = vst.msk [vmem:[%s2] sm:$0xf] %vm122, %v118
    %124 = vst.msk [vmem:[%s2 + $0x4] sm:$0xf] %vm122, %v119
  $region17: #{transformer_forward.17} parent=0 // pred_fallthru
    _
  // Predicated region
  $region18: #{transformer_forward.17} parent=0 // pred_check
    _
  $region19: #{transformer_forward.17} parent=0 // pred_check_branch
    %126 = sbr.rel (0) target = $region21
  $region20: #{transformer_forward.17} parent=0 // pred_region
    _
  $region21: #{transformer_forward.17} parent=0 // pred_fallthru
    _
  // Predicated region
  $region22: #{transformer_forward.17} parent=0 // pred_check
    _
  $region23: #{transformer_forward.17} parent=0 // pred_check_branch
    %128 = sbr.rel (0) target = $region25
  $region24: #{transformer_forward.17} parent=0 // pred_region
    _
  $region25: #{transformer_forward.17} parent=0 // pred_fallthru
    _

// kernel: transformer_forward.19
$region0: #{transformer_forward.19}
  #allocation0 [shape = 'u32[]', space=smem, size = 0x4, offset = 0x4, fixed_abs, tag = 'smem constant byte address 0x4 - core index']
  #allocation1 [shape = 'u32[144,128]{1,0:T(1,128)}', space=vmem, size = 0x12000, scoped, tag = 'internal scratch']
  #allocation2 [shape = 'f32[16,64]{1,0:T(8,128)}', space=vmem, size = 0x2000, scoped, tag = 'scratch operand']
  %s0 = inlined_call_operand.vmem [shape: bf16[16,64], index: 0, kind: input, shape index: {}]
  %s1 = inlined_call_operand.vmem [shape: bf16[64,192], index: 1, kind: input, shape index: {}]
  %s2 = inlined_call_operand.vmem [shape: bf16[64,192], index: 2, kind: input, shape index: {}]
  %s3 = inlined_call_operand.vmem [shape: bf16[192,64], index: 3, kind: input, shape index: {}]
  %s4 = inlined_call_operand.vmem [shape: bf16[16,64], index: 4, kind: output, shape index: {}]
  %s5 = sld [smem:[#allocation0]]
  $region34: #{transformer_forward.19} parent=0
    _
  %s7 = ssub.s32 1, %s5
  %s8 = scalar_select 0, %s7, %s5
  // Predicated region
  $region2: #{transformer_forward.19} parent=0 // pred_check
    _
  $region3: #{transformer_forward.19} parent=0 // pred_check_branch
    %10 = sbr.rel (0) target = $region5
  $region4: #{transformer_forward.19} parent=0 // pred_region
    _
  $region5: #{transformer_forward.19} parent=0 // pred_fallthru
    _
  // Predicated region
  $region6: #{transformer_forward.19} parent=0 // pred_check
    _
  $region7: #{transformer_forward.19} parent=0 // pred_check_branch
    %12 = sbr.rel (0) target = $region9
  $region8: #{transformer_forward.19} parent=0 // pred_region
    _
  $region9: #{transformer_forward.19} parent=0 // pred_fallthru
    _
  // Predicated region
  $region10: #{transformer_forward.19} parent=0 // pred_check
    _
  $region11: #{transformer_forward.19} parent=0 // pred_check_branch
    %14 = sbr.rel (0) target = $region13
  $region12: #{transformer_forward.19} parent=0 // pred_region
    _
  $region13: #{transformer_forward.19} parent=0 // pred_fallthru
    _
  // Predicated region
  $region14: #{transformer_forward.19} parent=0 // pred_check
    _
  $region15: #{transformer_forward.19} parent=0 // pred_check_branch
    %16 = sbr.rel (0) target = $region17
  $region16: #{transformer_forward.19} parent=0 // pred_region
    _
  $region17: #{transformer_forward.19} parent=0 // pred_fallthru
    _
  %p18 = scmp.eq.s32.totalorder 0, 0
  // Predicated region
  $region18: #{transformer_forward.19} parent=0 // pred_check
    %p19 = pneg %p18
  $region19: #{transformer_forward.19} parent=0 // pred_check_branch
    %21 = sbr.rel (%p19) target = $region21
  $region20: #{transformer_forward.19} parent=0 // pred_region
    %vm22 = vcmask 523264
    %23 = vst.msk [vmem:[#allocation2] sm:$0xff] %vm22, 0.0
    %24 = vst.msk [vmem:[#allocation2 + $0x8] sm:$0xff] %vm22, 0.0
  $region21: #{transformer_forward.19} parent=0 // pred_fallthru
    _
  %v25 = vld [vmem:[%s0] sm:$0xf]
  %v26 = vld [vmem:[%s0 + $0x4] sm:$0xf]
  %v27 = vld [vmem:[%s1] sm:$0xff]
  %v28 = vld [vmem:[%s1 + $0x8] sm:$0xff]
  %v29 = vld [vmem:[%s1 + $0x10] sm:$0xff]
  %v30 = vld [vmem:[%s1 + $0x18] sm:$0xff]
  %v31 = vld [vmem:[%s1 + $0x20] sm:$0xff]
  %v32 = vld [vmem:[%s1 + $0x28] sm:$0xff]
  %v33 = vld [vmem:[%s1 + $0x30] sm:$0xff]
  %v34 = vld [vmem:[%s1 + $0x38] sm:$0xff]
  %v37 = vunpack.c.l.b16 %v25
  %v38 = vunpack.c.l.b16 %v26
  %v39 = vpack.c.b16 %v38, %v37
  %v48 = vunpack.c.l.b16 %v27
  %v49 = vunpack.c.h.b16 %v27
  %v50 = vunpack.c.l.b16 %v28
  %v51 = vunpack.c.h.b16 %v28
  %v52 = vunpack.c.l.b16 %v29
  %v53 = vunpack.c.h.b16 %v29
  %v54 = vunpack.c.l.b16 %v30
  %v55 = vunpack.c.h.b16 %v30
  %v56 = vunpack.c.l.b16 %v31
  %v57 = vunpack.c.h.b16 %v31
  %v58 = vunpack.c.l.b16 %v32
  %v59 = vunpack.c.h.b16 %v32
  %v60 = vunpack.c.l.b16 %v33
  %v61 = vunpack.c.h.b16 %v33
  %v62 = vunpack.c.l.b16 %v34
  %v63 = vunpack.c.h.b16 %v34
  %v64 = vpack.c.b16 %v50, %v48
  %v65 = vpack.c.b16 %v51, %v49
  %v66 = vpack.c.b16 %v54, %v52
  %v67 = vpack.c.b16 %v55, %v53
  %v68 = vpack.c.b16 %v58, %v56
  %v69 = vpack.c.b16 %v59, %v57
  %v70 = vpack.c.b16 %v62, %v60
  %v71 = vpack.c.b16 %v63, %v61
  %vm80 = vcmask 523264
  %v82 = vsel %vm80, %v39, 0
  %84 = vmatprep.subr.bf16.mxu0 %v65
  %85 = vmatpush1.bf16.msra.mxu0 %v64
  %86 = vmatprep.subr.bf16.mxu0 %v67
  %87 = vmatpush1.bf16.msra.mxu0 %v66
  %88 = vmatprep.subr.bf16.mxu0 %v69
  %89 = vmatpush1.bf16.msra.mxu0 %v68
  %90 = vmatprep.subr.bf16.mxu0 %v71
  %91 = vmatpush1.bf16.msra.mxu0 %v70
  %92 = vmatprep.subr.bf16.mxu0 0
  %93 = vmatpush1.bf16.msra.mxu0 0
  %94 = vmatprep.subr.bf16.mxu0 0
  %95 = vmatpush1.bf16.msra.mxu0 0
  %96 = vmatprep.subr.bf16.mxu0 0
  %97 = vmatpush1.bf16.msra.mxu0 0
  %98 = vmatprep.subr.bf16.mxu0 0
  %99 = vmatpush1.bf16.msra.mxu0 0
  %100 = vmatprep.subr.bf16.mxu0 0
  %101 = vmatpush1.bf16.msra.mxu0 0
  %102 = vmatprep.subr.bf16.mxu0 0
  %103 = vmatpush1.bf16.msra.mxu0 0
  %104 = vmatprep.subr.bf16.mxu0 0
  %105 = vmatpush1.bf16.msra.mxu0 0
  %106 = vmatprep.subr.bf16.mxu0 0
  %107 = vmatpush1.bf16.msra.mxu0 0
  %108 = vmatprep.subr.bf16.mxu0 0
  %109 = vmatpush1.bf16.msra.mxu0 0
  %110 = vmatprep.subr.bf16.mxu0 0
  %111 = vmatpush1.bf16.msra.mxu0 0
  %112 = vmatprep.subr.bf16.mxu0 0
  %113 = vmatpush1.bf16.msra.mxu0 0
  %114 = vmatprep.subr.bf16.mxu0 0
  %115 = vmatpush1.bf16.msra.mxu0 0
  %116 = vmatprep.mubr.bf16.mxu0 0
  %117 = vmatmul.mubr.bf16.gmra.mrb[0].mxu0 %v82
  %v118 = vpop.f32.mrb[0].mxu0
  %v119 = vadd.f32 0.0, %v118
  %v120 = vpop.f32.mrb[0].mxu0
  %v121 = vadd.f32 0.0, %v120
  %v122 = vpop.f32.mrb[0].mxu0
  %v123 = vadd.f32 0.0, %v122
  %v124 = vpop.f32.mrb[0].mxu0
  %v125 = vadd.f32 0.0, %v124
  %126 = vdwg.mxu0
  %v127 = vld [vmem:[%s2] sm:$0xff]
  %v128 = vld [vmem:[%s2 + $0x8] sm:$0xff]
  %v129 = vld [vmem:[%s2 + $0x10] sm:$0xff]
  %v130 = vld [vmem:[%s2 + $0x18] sm:$0xff]
  %v131 = vld [vmem:[%s2 + $0x20] sm:$0xff]
  %v132 = vld [vmem:[%s2 + $0x28] sm:$0xff]
  %v133 = vld [vmem:[%s2 + $0x30] sm:$0xff]
  %v134 = vld [vmem:[%s2 + $0x38] sm:$0xff]
  %v143 = vunpack.c.l.b16 %v127
  %v144 = vunpack.c.h.b16 %v127
  %v145 = vunpack.c.l.b16 %v128
  %v146 = vunpack.c.h.b16 %v128
  %v147 = vunpack.c.l.b16 %v129
  %v148 = vunpack.c.h.b16 %v129
  %v149 = vunpack.c.l.b16 %v130
  %v150 = vunpack.c.h.b16 %v130
  %v151 = vunpack.c.l.b16 %v131
  %v152 = vunpack.c.h.b16 %v131
  %v153 = vunpack.c.l.b16 %v132
  %v154 = vunpack.c.h.b16 %v132
  %v155 = vunpack.c.l.b16 %v133
  %v156 = vunpack.c.h.b16 %v133
  %v157 = vunpack.c.l.b16 %v134
  %v158 = vunpack.c.h.b16 %v134
  %v159 = vpack.c.b16 %v145, %v143
  %v160 = vpack.c.b16 %v146, %v144
  %v161 = vpack.c.b16 %v149, %v147
  %v162 = vpack.c.b16 %v150, %v148
  %v163 = vpack.c.b16 %v153, %v151
  %v164 = vpack.c.b16 %v154, %v152
  %v165 = vpack.c.b16 %v157, %v155
  %v166 = vpack.c.b16 %v158, %v156
  %175 = vmatprep.subr.bf16.mxu0 %v160
  %176 = vmatpush1.bf16.msra.mxu0 %v159
  %177 = vmatprep.subr.bf16.mxu0 %v162
  %178 = vmatpush1.bf16.msra.mxu0 %v161
  %179 = vmatprep.subr.bf16.mxu0 %v164
  %180 = vmatpush1.bf16.msra.mxu0 %v163
  %181 = vmatprep.subr.bf16.mxu0 %v166
  %182 = vmatpush1.bf16.msra.mxu0 %v165
  %183 = vmatprep.subr.bf16.mxu0 0
  %184 = vmatpush1.bf16.msra.mxu0 0
  %185 = vmatprep.subr.bf16.mxu0 0
  %186 = vmatpush1.bf16.msra.mxu0 0
  %187 = vmatprep.subr.bf16.mxu0 0
  %188 = vmatpush1.bf16.msra.mxu0 0
  %189 = vmatprep.subr.bf16.mxu0 0
  %190 = vmatpush1.bf16.msra.mxu0 0
  %191 = vmatprep.subr.bf16.mxu0 0
  %192 = vmatpush1.bf16.msra.mxu0 0
  %193 = vmatprep.subr.bf16.mxu0 0
  %194 = vmatpush1.bf16.msra.mxu0 0
  %195 = vmatprep.subr.bf16.mxu0 0
  %196 = vmatpush1.bf16.msra.mxu0 0
  %197 = vmatprep.subr.bf16.mxu0 0
  %198 = vmatpush1.bf16.msra.mxu0 0
  %199 = vmatprep.subr.bf16.mxu0 0
  %200 = vmatpush1.bf16.msra.mxu0 0
  %201 = vmatprep.subr.bf16.mxu0 0
  %202 = vmatpush1.bf16.msra.mxu0 0
  %203 = vmatprep.subr.bf16.mxu0 0
  %204 = vmatpush1.bf16.msra.mxu0 0
  %205 = vmatprep.subr.bf16.mxu0 0
  %206 = vmatpush1.bf16.msra.mxu0 0
  %207 = vmatprep.mubr.bf16.mxu0 0
  %208 = vmatmul.mubr.bf16.gmra.mrb[0].mxu0 %v82
  %v209 = vpop.f32.mrb[0].mxu0
  %v210 = vadd.f32 0.0, %v209
  %v211 = vpop.f32.mrb[0].mxu0
  %v212 = vadd.f32 0.0, %v211
  %v213 = vpop.f32.mrb[0].mxu0
  %v214 = vadd.f32 0.0, %v213
  %v215 = vpop.f32.mrb[0].mxu0
  %v216 = vadd.f32 0.0, %v215
  %217 = vdwg.mxu0
  %v218 = vxor.u32 %v119, 2147483648
  %v219 = vxor.u32 %v121, 2147483648
  %v220 = vxor.u32 %v123, 2147483648
  %v221 = vxor.u32 %v125, 2147483648
  %v222 = vmul.f32 %v218, 1.442695
  %v223 = vpow.pop %v222
  %v224 = vmul.f32 %v219, 1.442695
  %v225 = vpow.pop %v224
  %v226 = vmul.f32 %v220, 1.442695
  %v227 = vpow.pop %v226
  %v228 = vmul.f32 %v221, 1.442695
  %v229 = vpow.pop %v228
  %v230 = vadd.f32 %v223, 1.0
  %v231 = vadd.f32 %v225, 1.0
  %v232 = vadd.f32 %v227, 1.0
  %v233 = vadd.f32 %v229, 1.0
  %v234 = vrcp.pop %v230
  %v235 = vmul.f32 1.0, %v234
  %v236 = vrcp.pop %v231
  %v237 = vmul.f32 1.0, %v236
  %v238 = vrcp.pop %v232
  %v239 = vmul.f32 1.0, %v238
  %v240 = vrcp.pop %v233
  %v241 = vmul.f32 1.0, %v240
  %v242 = vmul.f32 %v119, %v235
  %v243 = vmul.f32 %v121, %v237
  %v244 = vmul.f32 %v123, %v239
  %v245 = vmul.f32 %v125, %v241
  %v246 = vmul.f32 %v242, %v210
  %v247 = vmul.f32 %v243, %v212
  %v248 = vmul.f32 %v244, %v214
  %v249 = vmul.f32 %v245, %v216
  %v250 = vld [vmem:[#allocation2] sm:$0xff]
  %v251 = vld [vmem:[#allocation2 + $0x8] sm:$0xff]
  %v252 = vpack.c.bf16 %v248, %v246
  %v253 = vpack.c.bf16 %v249, %v247
  %v254 = vld [vmem:[%s3] sm:$0xf]
  %v255 = vld [vmem:[%s3 + $0x4] sm:$0xf]
  %v256 = vld [vmem:[%s3 + $0x8] sm:$0xf]
  %v257 = vld [vmem:[%s3 + $0xc] sm:$0xf]
  %v258 = vld [vmem:[%s3 + $0x10] sm:$0xf]
  %v259 = vld [vmem:[%s3 + $0x14] sm:$0xf]
  %v260 = vld [vmem:[%s3 + $0x18] sm:$0xf]
  %v261 = vld [vmem:[%s3 + $0x1c] sm:$0xf]
  %v262 = vld [vmem:[%s3 + $0x20] sm:$0xf]
  %v263 = vld [vmem:[%s3 + $0x24] sm:$0xf]
  %v264 = vld [vmem:[%s3 + $0x28] sm:$0xf]
  %v265 = vld [vmem:[%s3 + $0x2c] sm:$0xf]
  %v266 = vld [vmem:[%s3 + $0x30] sm:$0xf]
  %v267 = vld [vmem:[%s3 + $0x34] sm:$0xf]
  %v268 = vld [vmem:[%s3 + $0x38] sm:$0xf]
  %v269 = vld [vmem:[%s3 + $0x3c] sm:$0xf]
  %v270 = vld [vmem:[%s3 + $0x40] sm:$0xf]
  %v271 = vld [vmem:[%s3 + $0x44] sm:$0xf]
  %v272 = vld [vmem:[%s3 + $0x48] sm:$0xf]
  %v273 = vld [vmem:[%s3 + $0x4c] sm:$0xf]
  %v274 = vld [vmem:[%s3 + $0x50] sm:$0xf]
  %v275 = vld [vmem:[%s3 + $0x54] sm:$0xf]
  %v276 = vld [vmem:[%s3 + $0x58] sm:$0xf]
  %v277 = vld [vmem:[%s3 + $0x5c] sm:$0xf]
  %v302 = vunpack.c.l.b16 %v254
  %v303 = vunpack.c.l.b16 %v255
  %v304 = vunpack.c.l.b16 %v256
  %v305 = vunpack.c.l.b16 %v257
  %v306 = vunpack.c.l.b16 %v258
  %v307 = vunpack.c.l.b16 %v259
  %v308 = vunpack.c.l.b16 %v260
  %v309 = vunpack.c.l.b16 %v261
  %v310 = vunpack.c.l.b16 %v262
  %v311 = vunpack.c.l.b16 %v263
  %v312 = vunpack.c.l.b16 %v264
  %v313 = vunpack.c.l.b16 %v265
  %v314 = vunpack.c.l.b16 %v266
  %v315 = vunpack.c.l.b16 %v267
  %v316 = vunpack.c.l.b16 %v268
  %v317 = vunpack.c.l.b16 %v269
  %v318 = vunpack.c.l.b16 %v270
  %v319 = vunpack.c.l.b16 %v271
  %v320 = vunpack.c.l.b16 %v272
  %v321 = vunpack.c.l.b16 %v273
  %v322 = vunpack.c.l.b16 %v274
  %v323 = vunpack.c.l.b16 %v275
  %v324 = vunpack.c.l.b16 %v276
  %v325 = vunpack.c.l.b16 %v277
  %v326 = vpack.c.b16 %v303, %v302
  %v327 = vpack.c.b16 %v305, %v304
  %v328 = vpack.c.b16 %v307, %v306
  %v329 = vpack.c.b16 %v309, %v308
  %v330 = vpack.c.b16 %v311, %v310
  %v331 = vpack.c.b16 %v313, %v312
  %v332 = vpack.c.b16 %v315, %v314
  %v333 = vpack.c.b16 %v317, %v316
  %v334 = vpack.c.b16 %v319, %v318
  %v335 = vpack.c.b16 %v321, %v320
  %v336 = vpack.c.b16 %v323, %v322
  %v337 = vpack.c.b16 %v325, %v324
  %v351 = vsel %vm80, %v253, 0
  %353 = vmatprep.subr.bf16.mxu0 0
  %354 = vmatpush1.bf16.msra.mxu0 %v326
  %355 = vmatprep.subr.bf16.mxu0 0
  %356 = vmatpush1.bf16.msra.mxu0 %v327
  %357 = vmatprep.subr.bf16.mxu0 0
  %358 = vmatpush1.bf16.msra.mxu0 %v328
  %359 = vmatprep.subr.bf16.mxu0 0
  %360 = vmatpush1.bf16.msra.mxu0 %v329
  %361 = vmatprep.subr.bf16.mxu0 0
  %362 = vmatpush1.bf16.msra.mxu0 %v330
  %363 = vmatprep.subr.bf16.mxu0 0
  %364 = vmatpush1.bf16.msra.mxu0 %v331
  %365 = vmatprep.subr.bf16.mxu0 0
  %366 = vmatpush1.bf16.msra.mxu0 %v332
  %367 = vmatprep.subr.bf16.mxu0 0
  %368 = vmatpush1.bf16.msra.mxu0 %v333
  %369 = vmatprep.subr.bf16.mxu0 0
  %370 = vmatpush1.bf16.msra.mxu0 %v334
  %371 = vmatprep.subr.bf16.mxu0 0
  %372 = vmatpush1.bf16.msra.mxu0 %v335
  %373 = vmatprep.subr.bf16.mxu0 0
  %374 = vmatpush1.bf16.msra.mxu0 %v336
  %375 = vmatprep.subr.bf16.mxu0 0
  %376 = vmatpush1.bf16.msra.mxu0 %v337
  %377 = vmatprep.subr.bf16.mxu0 0
  %378 = vmatpush1.bf16.msra.mxu0 0
  %379 = vmatprep.subr.bf16.mxu0 0
  %380 = vmatpush1.bf16.msra.mxu0 0
  %381 = vmatprep.subr.bf16.mxu0 0
  %382 = vmatpush1.bf16.msra.mxu0 0
  %383 = vmatprep.subr.bf16.mxu0 0
  %384 = vmatpush1.bf16.msra.mxu0 0
  %385 = vmatprep.mubr.bf16.mxu0 %v351
  %386 = vmatmul.mubr.bf16.gmra.mrb[0].mxu0 %v252
  %v387 = vpop.f32.mrb[0].mxu0
  %v388 = vadd.f32 0.0, %v387
  %v389 = vpop.f32.mrb[0].mxu0
  %v390 = vpop.f32.mrb[0].mxu0
  %v391 = vadd.f32 0.0, %v390
  %v392 = vpop.f32.mrb[0].mxu0
  %393 = vdwg.mxu0
  %v394 = vadd.f32 %v250, %v388
  %v395 = vadd.f32 %v251, %v391
  %396 = vst.msk [vmem:[#allocation2] sm:$0xff] %vm80, %v394
  %397 = vst.msk [vmem:[#allocation2 + $0x8] sm:$0xff] %vm80, %v395
  // Predicated region
  $region22: #{transformer_forward.19} parent=0 // pred_check
    %p398 = pneg %p18
  $region23: #{transformer_forward.19} parent=0 // pred_check_branch
    %400 = sbr.rel (%p398) target = $region25
  $region24: #{transformer_forward.19} parent=0 // pred_region
    %v401 = vld [vmem:[#allocation2] sm:$0xff]
    %v402 = vld [vmem:[#allocation2 + $0x8] sm:$0xff]
    %v403 = vpack.c.bf16 %v402, %v401
    %v405 = vunpack.c.l.b16 %v403
    %v406 = vunpack.c.h.b16 %v403
    %v407 = vpack.c.b16 %v405, %v405
    %v408 = vpack.c.b16 %v406, %v406
    %vm411 = vcmask 519168
    %412 = vst.msk [vmem:[%s4] sm:$0xf] %vm411, %v407
    %413 = vst.msk [vmem:[%s4 + $0x4] sm:$0xf] %vm411, %v408
  $region25: #{transformer_forward.19} parent=0 // pred_fallthru
    _
  // Predicated region
  $region26: #{transformer_forward.19} parent=0 // pred_check
    _
  $region27: #{transformer_forward.19} parent=0 // pred_check_branch
    %415 = sbr.rel (0) target = $region29
  $region28: #{transformer_forward.19} parent=0 // pred_region
    _
  $region29: #{transformer_forward.19} parent=0 // pred_fallthru
    _
  // Predicated region
  $region30: #{transformer_forward.19} parent=0 // pred_check
    _
  $region31: #{transformer_forward.19} parent=0 // pred_check_branch
    %417 = sbr.rel (0) target = $region33
  $region32: #{transformer_forward.19} parent=0 // pred_region
    _
  $region33: #{transformer_forward.19} parent=0 // pred_fallthru
    _

// kernel: transformer_forward.16
$region0: #{transformer_forward.16}
  #allocation0 [shape = 'u32[]', space=smem, size = 0x4, offset = 0x4, fixed_abs, tag = 'smem constant byte address 0x4 - core index']
  #allocation1 [shape = 'u32[144,128]{1,0:T(1,128)}', space=vmem, size = 0x12000, scoped, tag = 'internal scratch']
  #allocation2 [shape = 'f32[8,1]{1,0:T(8,128)}', space=vmem, size = 0x1000, scoped, tag = 'scratch operand']
  #allocation3 [shape = 'f32[8,1]{1,0:T(8,128)}', space=vmem, size = 0x1000, scoped, tag = 'scratch operand']
  #allocation4 [shape = 'f32[8,16]{1,0:T(8,128)}', space=vmem, size = 0x1000, scoped, tag = 'scratch operand']
  %s0 = inlined_call_operand.vmem [shape: bf16[8,8,16], index: 0, kind: input, shape index: {}]
  %s1 = inlined_call_operand.vmem [shape: bf16[8,8,16], index: 1, kind: input, shape index: {}]
  %s2 = inlined_call_operand.vmem [shape: bf16[8,8,16], index: 2, kind: input, shape index: {}]
  %s3 = inlined_call_operand.vmem [shape: bf16[8,8,16], index: 3, kind: output, shape index: {}]
  %s4 = sld [smem:[#allocation0]]
  $region61: #{transformer_forward.16} parent=0
    _
  %s6 = ssub.s32 1, %s4
  %s7 = scalar_select 0, %s6, %s4
  loop: start=0, step=1, limit=10
  $region2: #{transformer_forward.16} parent=0 // loop_pre_header
    _
  $region3: #{transformer_forward.16} parent=0 // loop_header
    %s9 = sphi 0, %s13
    %p10 = scmp.ge.s32.totalorder %s9, 10
    %s16 = sphi 0, %s35
    %s17 = sphi 0, %s31
    %s18 = sphi 0, %s27
    %s19 = sphi 0, %s16
    %s20 = sphi 0, %s17
    %s21 = sphi 0, %s18
    %s22 = sphi 0, %s19
    %s23 = sphi 0, %s20
    %s24 = sphi 0, %s21
    %s40 = sphi 0, %s42
    %s43 = sphi 0, %s40
    %s44 = sphi 0, %s43
    %s60 = sphi 0, %s44
    %s68 = sphi 0, %s70
    %s71 = sphi 0, %s68
    %s72 = sphi 0, %s71
    %s88 = sphi 0, %s72
    %s96 = sphi 0, %s98
    %s99 = sphi 0, %s96
    %s100 = sphi 0, %s99
    %s116 = sphi 0, %s100
    %s124 = sphi 0, %s126
    %s127 = sphi 0, %s124
    %s128 = sphi 0, %s127
    %s144 = sphi 0, %s128
  $region4: #{transformer_forward.16} parent=0 // loop_header_branch
    %12 = sbr.rel (%p10) target = $region8
  $region5: #{transformer_forward.16} parent=0 // loop_body
    %s14 = ssub.s32 %s9, 1
    %s15 = ssub.s32 %s9, 2
    %s25 = sadd.s32 1, %s18
    %p26 = scmp.ge.s32.totalorder %s25, 1
    %s27 = scalar_select %p26, 0, %s25
    %s28 = sadd.s32 1, %s17
    %s29 = scalar_select %p26, %s28, %s17
    %p30 = scmp.ge.s32.totalorder %s29, 1
    %s31 = scalar_select %p30, 0, %s29
    %s32 = sadd.s32 1, %s16
    %s33 = scalar_select %p30, %s32, %s16
    %p34 = scmp.ge.s32.totalorder %s33, 8
    %s35 = scalar_select %p34, 0, %s33
    %s36 = ssub.s32 %s16, %s35
    %s37 = ssub.s32 %s17, %s31
    %s38 = sor.u32 %s36, %s37
    %p39 = scmp.eq.s32.totalorder %s38, 0
    %s41 = sadd.s32 %s40, 1
    %s42 = scalar_select %p39, %s40, %s41
    %p45 = pneg %p39
    %p46 = scmp.eq.s32.totalorder %s9, 7
    %p47 = por %p45, %p46
    %p48 = scmp.ne.s32.totalorder %s40, %s43
    %p49 = scmp.eq.s32.totalorder %s9, 0
    %p50 = por %p48, %p49
    %p51 = scmp.ne.s32.totalorder %s40, %s43
    %p52 = scmp.eq.s32.totalorder %s14, 7
    %p53 = por %p51, %p52
    %p54 = scmp.ne.s32.totalorder %s43, %s44
    %p55 = scmp.eq.s32.totalorder %s14, 0
    %p56 = por %p54, %p55
    %p57 = scmp.ne.s32.totalorder %s43, %s44
    %p58 = scmp.eq.s32.totalorder %s15, 7
    %p59 = por %p57, %p58
    %p61 = scmp.ne.s32.totalorder %s44, %s60
    %p62 = scmp.eq.s32.totalorder %s15, 0
    %p63 = por %p61, %p62
    %s64 = ssub.s32 %s16, %s35
    %s65 = ssub.s32 %s18, %s27
    %s66 = sor.u32 %s64, %s65
    %p67 = scmp.eq.s32.totalorder %s66, 0
    %s69 = sadd.s32 %s68, 1
    %s70 = scalar_select %p67, %s68, %s69
    %p73 = pneg %p67
    %p74 = scmp.eq.s32.totalorder %s9, 7
    %p75 = por %p73, %p74
    %p76 = scmp.ne.s32.totalorder %s68, %s71
    %p77 = scmp.eq.s32.totalorder %s9, 0
    %p78 = por %p76, %p77
    %p79 = scmp.ne.s32.totalorder %s68, %s71
    %p80 = scmp.eq.s32.totalorder %s14, 7
    %p81 = por %p79, %p80
    %p82 = scmp.ne.s32.totalorder %s71, %s72
    %p83 = scmp.eq.s32.totalorder %s14, 0
    %p84 = por %p82, %p83
    %p85 = scmp.ne.s32.totalorder %s71, %s72
    %p86 = scmp.eq.s32.totalorder %s15, 7
    %p87 = por %p85, %p86
    %p89 = scmp.ne.s32.totalorder %s72, %s88
    %p90 = scmp.eq.s32.totalorder %s15, 0
    %p91 = por %p89, %p90
    %s92 = ssub.s32 %s16, %s35
    %s93 = ssub.s32 %s18, %s27
    %s94 = sor.u32 %s92, %s93
    %p95 = scmp.eq.s32.totalorder %s94, 0
    %s97 = sadd.s32 %s96, 1
    %s98 = scalar_select %p95, %s96, %s97
    %p101 = pneg %p95
    %p102 = scmp.eq.s32.totalorder %s9, 7
    %p103 = por %p101, %p102
    %p104 = scmp.ne.s32.totalorder %s96, %s99
    %p105 = scmp.eq.s32.totalorder %s9, 0
    %p106 = por %p104, %p105
    %p107 = scmp.ne.s32.totalorder %s96, %s99
    %p108 = scmp.eq.s32.totalorder %s14, 7
    %p109 = por %p107, %p108
    %p110 = scmp.ne.s32.totalorder %s99, %s100
    %p111 = scmp.eq.s32.totalorder %s14, 0
    %p112 = por %p110, %p111
    %p113 = scmp.ne.s32.totalorder %s99, %s100
    %p114 = scmp.eq.s32.totalorder %s15, 7
    %p115 = por %p113, %p114
    %p117 = scmp.ne.s32.totalorder %s100, %s116
    %p118 = scmp.eq.s32.totalorder %s15, 0
    %p119 = por %p117, %p118
    %s120 = ssub.s32 %s16, %s35
    %s121 = ssub.s32 %s17, %s31
    %s122 = sor.u32 %s120, %s121
    %p123 = scmp.eq.s32.totalorder %s122, 0
    %s125 = sadd.s32 %s124, 1
    %s126 = scalar_select %p123, %s124, %s125
    %p129 = pneg %p123
    %p130 = scmp.eq.s32.totalorder %s9, 7
    %p131 = por %p129, %p130
    %p132 = scmp.ne.s32.totalorder %s124, %s127
    %p133 = scmp.eq.s32.totalorder %s9, 0
    %p134 = por %p132, %p133
    %p135 = scmp.ne.s32.totalorder %s124, %s127
    %p136 = scmp.eq.s32.totalorder %s14, 7
    %p137 = por %p135, %p136
    %p138 = scmp.ne.s32.totalorder %s127, %s128
    %p139 = scmp.eq.s32.totalorder %s14, 0
    %p140 = por %p138, %p139
    %p141 = scmp.ne.s32.totalorder %s127, %s128
    %p142 = scmp.eq.s32.totalorder %s15, 7
    %p143 = por %p141, %p142
    %p145 = scmp.ne.s32.totalorder %s128, %s144
    %p146 = scmp.eq.s32.totalorder %s15, 0
    %p147 = por %p145, %p146
    %p148 = scmp.le.s32.totalorder 1, %s9
    %p149 = scmp.lt.s32.totalorder %s9, 9
    %p150 = pnand %p148, %p149
    %p151 = pneg %p150
    // Predicated region
    $region9: #{transformer_forward.16} parent=5 // pred_check
      _
    $region10: #{transformer_forward.16} parent=5 // pred_check_branch
      %153 = sbr.rel (%p150) target = $region12
    $region11: #{transformer_forward.16} parent=5 // pred_region
      %s154 = ssub.s32 %s9, 1
    $region12: #{transformer_forward.16} parent=5 // pred_fallthru
      _
    %p155 = scmp.lt.s32.totalorder %s9, 8
    // Predicated region
    $region13: #{transformer_forward.16} parent=5 // pred_check
      %p156 = pneg %p155
    $region14: #{transformer_forward.16} parent=5 // pred_check_branch
      %158 = sbr.rel (%p156) target = $region16
    $region15: #{transformer_forward.16} parent=5 // pred_region
      // Predicated region
      $region17: #{transformer_forward.16} parent=15 // pred_check
        %p159 = pneg %p50
      $region18: #{transformer_forward.16} parent=15 // pred_check_branch
        %161 = sbr.rel (%p159) target = $region20
      $region19: #{transformer_forward.16} parent=15 // pred_region
        %p162 = scmp.lt.s32.totalorder %s16, 7
        %s163 = scalar_select %p162, %s16, 7
        %p164 = scmp.lt.s32.totalorder %s17, 0
        %s165 = scalar_select %p164, %s17, 0
        %s166 = sadd.s32 %s165, %s163
        %s167 = smul.addr %s166, 4
        %s168 = scalar_lea.vmem %s0, %s167
      $region20: #{transformer_forward.16} parent=15 // pred_fallthru
        _
      // Predicated region
      $region21: #{transformer_forward.16} parent=15 // pred_check
        %p169 = pneg %p78
      $region22: #{transformer_forward.16} parent=15 // pred_check_branch
        %171 = sbr.rel (%p169) target = $region24
      $region23: #{transformer_forward.16} parent=15 // pred_region
        %p172 = scmp.lt.s32.totalorder %s16, 7
        %s173 = scalar_select %p172, %s16, 7
        %p174 = scmp.lt.s32.totalorder %s18, 0
        %s175 = scalar_select %p174, %s18, 0
        %s176 = sadd.s32 %s175, %s173
        %s177 = smul.addr %s176, 4
        %s178 = scalar_lea.vmem %s1, %s177
      $region24: #{transformer_forward.16} parent=15 // pred_fallthru
        _
      // Predicated region
      $region25: #{transformer_forward.16} parent=15 // pred_check
        %p179 = pneg %p106
      $region26: #{transformer_forward.16} parent=15 // pred_check_branch
        %181 = sbr.rel (%p179) target = $region28
      $region27: #{transformer_forward.16} parent=15 // pred_region
        %p182 = scmp.lt.s32.totalorder %s16, 7
        %s183 = scalar_select %p182, %s16, 7
        %p184 = scmp.lt.s32.totalorder %s18, 0
        %s185 = scalar_select %p184, %s18, 0
        %s186 = sadd.s32 %s185, %s183
        %s187 = smul.addr %s186, 4
        %s188 = scalar_lea.vmem %s2, %s187
      $region28: #{transformer_forward.16} parent=15 // pred_fallthru
        _
    $region16: #{transformer_forward.16} parent=5 // pred_fallthru
      _
    %p189 = scmp.le.s32.totalorder 1, %s9
    %p190 = scmp.lt.s32.totalorder %s9, 9
    %p191 = pnand %p189, %p190
    %p192 = pneg %p191
    // Predicated region
    $region29: #{transformer_forward.16} parent=5 // pred_check
      _
    $region30: #{transformer_forward.16} parent=5 // pred_check_branch
      %194 = sbr.rel (%p191) target = $region32
    $region31: #{transformer_forward.16} parent=5 // pred_region
      %s195 = ssub.s32 %s9, 1
      %p196 = scmp.lt.s32.totalorder %s19, 7
      %s197 = scalar_select %p196, %s19, 7
      %p198 = scmp.lt.s32.totalorder %s20, 0
      %s199 = scalar_select %p198, %s20, 0
      %s200 = sadd.s32 %s199, %s197
      %s201 = smul.addr %s200, 4
      %s202 = scalar_lea.vmem %s0, %s201
      %p203 = pneg %p56
      %p204 = pneg %p53
      %p205 = scmp.lt.s32.totalorder %s19, 7
      %s206 = scalar_select %p205, %s19, 7
      %p207 = scmp.lt.s32.totalorder %s21, 0
      %s208 = scalar_select %p207, %s21, 0
      %s209 = sadd.s32 %s208, %s206
      %s210 = smul.addr %s209, 4
      %s211 = scalar_lea.vmem %s1, %s210
      %p212 = pneg %p84
      %p213 = pneg %p81
      %p214 = scmp.lt.s32.totalorder %s19, 7
      %s215 = scalar_select %p214, %s19, 7
      %p216 = scmp.lt.s32.totalorder %s21, 0
      %s217 = scalar_select %p216, %s21, 0
      %s218 = sadd.s32 %s217, %s215
      %s219 = smul.addr %s218, 4
      %s220 = scalar_lea.vmem %s2, %s219
      %p221 = pneg %p112
      %p222 = pneg %p109
      %p223 = pneg %p140
      %p224 = pneg %p137
      %p225 = scmp.lt.s32.totalorder %s19, 7
      %s226 = scalar_select %p225, %s19, 7
      %p227 = scmp.lt.s32.totalorder %s20, 0
      %s228 = scalar_select %p227, %s20, 0
      %s229 = sadd.s32 %s228, %s226
      %s230 = smul.addr %s229, 4
      %s231 = scalar_lea.vmem %s3, %s230
      %p232 = scmp.lt.s32.totalorder %s19, 7
      %s233 = scalar_select %p232, %s19, 7
      %p234 = scmp.lt.s32.totalorder %s20, 0
      %s235 = scalar_select %p234, %s20, 0
      %s236 = sadd.s32 %s235, %s233
      %s237 = smul.addr %s236, 4
      %s238 = scalar_lea.vmem %s0, %s237
      %p239 = scmp.lt.s32.totalorder %s19, 7
      %s240 = scalar_select %p239, %s19, 7
      %p241 = scmp.lt.s32.totalorder %s21, 0
      %s242 = scalar_select %p241, %s21, 0
      %s243 = sadd.s32 %s242, %s240
      %s244 = smul.addr %s243, 4
      %s245 = scalar_lea.vmem %s1, %s244
      %p246 = scmp.lt.s32.totalorder %s19, 7
      %s247 = scalar_select %p246, %s19, 7
      %p248 = scmp.lt.s32.totalorder %s21, 0
      %s249 = scalar_select %p248, %s21, 0
      %s250 = sadd.s32 %s249, %s247
      %s251 = smul.addr %s250, 4
      %s252 = scalar_lea.vmem %s2, %s251
      %p253 = scmp.lt.s32.totalorder %s19, 7
      %s254 = scalar_select %p253, %s19, 7
      %p255 = scmp.lt.s32.totalorder %s20, 0
      %s256 = scalar_select %p255, %s20, 0
      %s257 = sadd.s32 %s256, %s254
      %s258 = smul.addr %s257, 4
      %s259 = scalar_lea.vmem %s3, %s258
      %p261 = scmp.eq.s32.totalorder %s21, 0
      // Predicated region
      $region33: #{transformer_forward.16} parent=31 // pred_check
        %p262 = pneg %p261
      $region34: #{transformer_forward.16} parent=31 // pred_check_branch
        %264 = sbr.rel (%p262) target = $region36
      $region35: #{transformer_forward.16} parent=31 // pred_region
        %vm265 = vcmask 7168
        %266 = vst.msk [vmem:[#allocation2] sm:$0xff] %vm265, -inf
        %267 = vst.msk [vmem:[#allocation3] sm:$0xff] %vm265, 0.0
        %vm268 = vcmask 130048
        %269 = vst.msk [vmem:[#allocation4] sm:$0xff] %vm268, 0.0
      $region36: #{transformer_forward.16} parent=31 // pred_fallthru
        _
      %s270 = smul.u32 %s20, 8
      %s271 = sadd.s32 %s270, 7
      %s272 = smul.u32 %s21, 8
      %s273 = sadd.s32 %s272, 7
      %p274 = scmp.le.s32.totalorder %s273, %s270
      // Predicated region
      $region37: #{transformer_forward.16} parent=31 // pred_check
        %p275 = pneg %p274
      $region38: #{transformer_forward.16} parent=31 // pred_check_branch
        %277 = sbr.rel (%p275) target = $region40
      $region39: #{transformer_forward.16} parent=31 // pred_region
        %v278 = vld [vmem:[%s238] sm:$0xf]
        %v279 = vunpack.c.l.bf16 %v278
        %v280 = vmul.f32 %v279, 0.25
        %v281 = vpack.c.bf16 %v280, %v280
        %v282 = vld [vmem:[%s245] sm:$0xf]
        %v283 = vld [vmem:[%s252] sm:$0xf]
        %vm284 = vcmask 130048
        %v286 = vsel %vm284, %v281, 0
        %v289 = vsel %vm284, %v282, 0
        %291 = vmatprep.subr.bf16.mxu0 0
        %292 = vmatpush1.bf16.xpose.msra.mxu0 %v289
        %293 = vmatprep.subr.bf16.mxu0 0
        %294 = vmatpush1.bf16.xpose.msra.mxu0 0
        %295 = vmatprep.subr.bf16.mxu0 0
        %296 = vmatpush1.bf16.xpose.msra.mxu0 0
        %297 = vmatprep.subr.bf16.mxu0 0
        %298 = vmatpush1.bf16.xpose.msra.mxu0 0
        %299 = vmatprep.subr.bf16.mxu0 0
        %300 = vmatpush1.bf16.xpose.msra.mxu0 0
        %301 = vmatprep.subr.bf16.mxu0 0
        %302 = vmatpush1.bf16.xpose.msra.mxu0 0
        %303 = vmatprep.subr.bf16.mxu0 0
        %304 = vmatpush1.bf16.xpose.msra.mxu0 0
        %305 = vmatprep.subr.bf16.mxu0 0
        %306 = vmatpush1.bf16.xpose.msra.mxu0 0
        %307 = vmatprep.subr.bf16.mxu0 0
        %308 = vmatpush1.bf16.xpose.msra.mxu0 0
        %309 = vmatprep.subr.bf16.mxu0 0
        %310 = vmatpush1.bf16.xpose.msra.mxu0 0
        %311 = vmatprep.subr.bf16.mxu0 0
        %312 = vmatpush1.bf16.xpose.msra.mxu0 0
        %313 = vmatprep.subr.bf16.mxu0 0
        %314 = vmatpush1.bf16.xpose.msra.mxu0 0
        %315 = vmatprep.subr.bf16.mxu0 0
        %316 = vmatpush1.bf16.xpose.msra.mxu0 0
        %317 = vmatprep.subr.bf16.mxu0 0
        %318 = vmatpush1.bf16.xpose.msra.mxu0 0
        %319 = vmatprep.subr.bf16.mxu0 0
        %320 = vmatpush1.bf16.xpose.msra.mxu0 0
        %321 = vmatprep.subr.bf16.mxu0 0
        %322 = vmatpush1.bf16.xpose.msra.mxu0 0
        %323 = vmatprep.mubr.bf16.mxu0 0
        %324 = vmatmul.mubr.bf16.gmra.mrb[0].mxu0 %v286
        %v325 = vpop.f32.mrb[0].mxu0
        %v326 = vadd.f32 0.0, %v325
        %v327 = vpop.f32.mrb[0].mxu0
        %v328 = vpop.f32.mrb[0].mxu0
        %v329 = vpop.f32.mrb[0].mxu0
        %330 = vdwg.mxu0
        %v331 = vld [vmem:[#allocation2] sm:$0xff]
        %vm332 = vcmask 64512
        %v333 = vsel %vm332, %v326, -inf
        %334 = vmax.xlane.f32.xlu0 %v333
        %v335 = vpop.xlane.xlu0 %334
        %v336 = vmax.f32 %v331, %v335
        %v337 = vsub.f32 %v331, %v336
        %v338 = vmul.f32 %v337, 1.442695
        %v339 = vpow.pop %v338
        %341 = vset.pattern.permute.xlu0 0
        %342 = vperm.xlu0 %341, %v336
        %v343 = vpop.permute.xlu0 %342
        %v345 = vsub.f32 %v326, %v343
        %v346 = vmul.f32 %v345, 1.442695
        %v347 = vpow.pop %v346
        %v348 = vld [vmem:[#allocation3] sm:$0xff]
        %v349 = vmul.f32 %v339, %v348
        %v350 = vsel %vm332, %v347, 0.0
        %351 = vadd.xlane.f32.xlu0 %v350
        %v352 = vpop.xlane.xlu0 %351
        %v353 = vadd.f32 %v349, %v352
        %vm354 = vcmask 7168
        %355 = vst.msk [vmem:[#allocation3] sm:$0xff] %vm354, %v353
        %v356 = vld [vmem:[#allocation4] sm:$0xff]
        %358 = vset.pattern.permute.xlu0 0
        %359 = vperm.xlu0 %358, %v339
        %v360 = vpop.permute.xlu0 %359
        %v362 = vmul.f32 %v360, %v356
        %v363 = vpack.c.bf16 %v347, %v347
        %v365 = vsel %vm332, %v363, 0
        %vm367 = vcmask 1043456
        %v369 = vsel %vm367, %v283, 0
        %371 = vmatprep.subr.bf16.mxu0 0
        %372 = vmatpush1.bf16.msra.mxu0 %v369
        %373 = vmatprep.subr.bf16.mxu0 0
        %374 = vmatpush1.bf16.msra.mxu0 0
        %375 = vmatprep.subr.bf16.mxu0 0
        %376 = vmatpush1.bf16.msra.mxu0 0
        %377 = vmatprep.subr.bf16.mxu0 0
        %378 = vmatpush1.bf16.msra.mxu0 0
        %379 = vmatprep.subr.bf16.mxu0 0
        %380 = vmatpush1.bf16.msra.mxu0 0
        %381 = vmatprep.subr.bf16.mxu0 0
        %382 = vmatpush1.bf16.msra.mxu0 0
        %383 = vmatprep.subr.bf16.mxu0 0
        %384 = vmatpush1.bf16.msra.mxu0 0
        %385 = vmatprep.subr.bf16.mxu0 0
        %386 = vmatpush1.bf16.msra.mxu0 0
        %387 = vmatprep.subr.bf16.mxu0 0
        %388 = vmatpush1.bf16.msra.mxu0 0
        %389 = vmatprep.subr.bf16.mxu0 0
        %390 = vmatpush1.bf16.msra.mxu0 0
        %391 = vmatprep.subr.bf16.mxu0 0
        %392 = vmatpush1.bf16.msra.mxu0 0
        %393 = vmatprep.subr.bf16.mxu0 0
        %394 = vmatpush1.bf16.msra.mxu0 0
        %395 = vmatprep.subr.bf16.mxu0 0
        %396 = vmatpush1.bf16.msra.mxu0 0
        %397 = vmatprep.subr.bf16.mxu0 0
        %398 = vmatpush1.bf16.msra.mxu0 0
        %399 = vmatprep.subr.bf16.mxu0 0
        %400 = vmatpush1.bf16.msra.mxu0 0
        %401 = vmatprep.subr.bf16.mxu0 0
        %402 = vmatpush1.bf16.msra.mxu0 0
        %403 = vmatprep.mubr.bf16.mxu0 0
        %404 = vmatmul.mubr.bf16.gmra.mrb[0].mxu0 %v365
        %v405 = vpop.f32.mrb[0].mxu0
        %v406 = vadd.f32 0.0, %v405
        %v407 = vpop.f32.mrb[0].mxu0
        %v408 = vpop.f32.mrb[0].mxu0
        %v409 = vpop.f32.mrb[0].mxu0
        %410 = vdwg.mxu0
        %v411 = vadd.f32 %v362, %v406
        %412 = vst.msk [vmem:[#allocation4] sm:$0xff] %vm284, %v411
        %413 = vst.msk [vmem:[#allocation2] sm:$0xff] %vm354, %v336
      $region40: #{transformer_forward.16} parent=31 // pred_fallthru
        _
      %p414 = scmp.le.s32.totalorder %s272, %s271
      %p415 = scmp.gt.s32.totalorder %s273, %s270
      %p416 = pnand %p414, %p415
      %p417 = pneg %p416
      // Predicated region
      $region41: #{transformer_forward.16} parent=31 // pred_check
        _
      $region42: #{transformer_forward.16} parent=31 // pred_check_branch
        %419 = sbr.rel (%p416) target = $region44
      $region43: #{transformer_forward.16} parent=31 // pred_region
        %v420 = vld [vmem:[%s238] sm:$0xf]
        %v421 = vunpack.c.l.bf16 %v420
        %v422 = vmul.f32 %v421, 0.25
        %v423 = vpack.c.bf16 %v422, %v422
        %v424 = vld [vmem:[%s245] sm:$0xf]
        %v425 = vld [vmem:[%s252] sm:$0xf]
        %vm426 = vcmask 130048
        %v428 = vsel %vm426, %v423, 0
        %v431 = vsel %vm426, %v424, 0
        %433 = vmatprep.subr.bf16.mxu0 0
        %434 = vmatpush1.bf16.xpose.msra.mxu0 %v431
        %435 = vmatprep.subr.bf16.mxu0 0
        %436 = vmatpush1.bf16.xpose.msra.mxu0 0
        %437 = vmatprep.subr.bf16.mxu0 0
        %438 = vmatpush1.bf16.xpose.msra.mxu0 0
        %439 = vmatprep.subr.bf16.mxu0 0
        %440 = vmatpush1.bf16.xpose.msra.mxu0 0
        %441 = vmatprep.subr.bf16.mxu0 0
        %442 = vmatpush1.bf16.xpose.msra.mxu0 0
        %443 = vmatprep.subr.bf16.mxu0 0
        %444 = vmatpush1.bf16.xpose.msra.mxu0 0
        %445 = vmatprep.subr.bf16.mxu0 0
        %446 = vmatpush1.bf16.xpose.msra.mxu0 0
        %447 = vmatprep.subr.bf16.mxu0 0
        %448 = vmatpush1.bf16.xpose.msra.mxu0 0
        %449 = vmatprep.subr.bf16.mxu0 0
        %450 = vmatpush1.bf16.xpose.msra.mxu0 0
        %451 = vmatprep.subr.bf16.mxu0 0
        %452 = vmatpush1.bf16.xpose.msra.mxu0 0
        %453 = vmatprep.subr.bf16.mxu0 0
        %454 = vmatpush1.bf16.xpose.msra.mxu0 0
        %455 = vmatprep.subr.bf16.mxu0 0
        %456 = vmatpush1.bf16.xpose.msra.mxu0 0
        %457 = vmatprep.subr.bf16.mxu0 0
        %458 = vmatpush1.bf16.xpose.msra.mxu0 0
        %459 = vmatprep.subr.bf16.mxu0 0
        %460 = vmatpush1.bf16.xpose.msra.mxu0 0
        %461 = vmatprep.subr.bf16.mxu0 0
        %462 = vmatpush1.bf16.xpose.msra.mxu0 0
        %463 = vmatprep.subr.bf16.mxu0 0
        %464 = vmatpush1.bf16.xpose.msra.mxu0 0
        %465 = vmatprep.mubr.bf16.mxu0 0
        %466 = vmatmul.mubr.bf16.gmra.mrb[0].mxu0 %v428
        %v467 = vpop.f32.mrb[0].mxu0
        %v468 = vadd.f32 0.0, %v467
        %v469 = vpop.f32.mrb[0].mxu0
        %v470 = vpop.f32.mrb[0].mxu0
        %v471 = vpop.f32.mrb[0].mxu0
        %472 = vdwg.mxu0
        %v473 = vlaneseq
        %v474 = vshrl.u32 %v473, 7
        %v475 = vstv %s270
        %v476 = vadd.s32 %v475, %v474
        %v477 = vlaneseq
        %v478 = vand.u32 %v477, 127
        %v479 = vstv %s272
        %v480 = vadd.s32 %v479, %v478
        %vm481 = vcmp.le.s32.totalorder %v480, %v476
        %v482 = vsel %vm481, %v468, -1e+30
        %v483 = vld [vmem:[#allocation2] sm:$0xff]
        %vm484 = vcmask 64512
        %v485 = vsel %vm484, %v482, -inf
        %486 = vmax.xlane.f32.xlu0 %v485
        %v487 = vpop.xlane.xlu0 %486
        %v488 = vmax.f32 %v483, %v487
        %v489 = vsub.f32 %v483, %v488
        %v490 = vmul.f32 %v489, 1.442695
        %v491 = vpow.pop %v490
        %493 = vset.pattern.permute.xlu0 0
        %494 = vperm.xlu0 %493, %v488
        %v495 = vpop.permute.xlu0 %494
        %v497 = vsub.f32 %v482, %v495
        %v498 = vmul.f32 %v497, 1.442695
        %v499 = vpow.pop %v498
        %v500 = vld [vmem:[#allocation3] sm:$0xff]
        %v501 = vmul.f32 %v491, %v500
        %v502 = vsel %vm484, %v499, 0.0
        %503 = vadd.xlane.f32.xlu0 %v502
        %v504 = vpop.xlane.xlu0 %503
        %v505 = vadd.f32 %v501, %v504
        %vm506 = vcmask 7168
        %507 = vst.msk [vmem:[#allocation3] sm:$0xff] %vm506, %v505
        %v508 = vld [vmem:[#allocation4] sm:$0xff]
        %510 = vset.pattern.permute.xlu0 0
        %511 = vperm.xlu0 %510, %v491
        %v512 = vpop.permute.xlu0 %511
        %v514 = vmul.f32 %v512, %v508
        %v515 = vpack.c.bf16 %v499, %v499
        %v517 = vsel %vm484, %v515, 0
        %vm519 = vcmask 1043456
        %v521 = vsel %vm519, %v425, 0
        %523 = vmatprep.subr.bf16.mxu0 0
        %524 = vmatpush1.bf16.msra.mxu0 %v521
        %525 = vmatprep.subr.bf16.mxu0 0
        %526 = vmatpush1.bf16.msra.mxu0 0
        %527 = vmatprep.subr.bf16.mxu0 0
        %528 = vmatpush1.bf16.msra.mxu0 0
        %529 = vmatprep.subr.bf16.mxu0 0
        %530 = vmatpush1.bf16.msra.mxu0 0
        %531 = vmatprep.subr.bf16.mxu0 0
        %532 = vmatpush1.bf16.msra.mxu0 0
        %533 = vmatprep.subr.bf16.mxu0 0
        %534 = vmatpush1.bf16.msra.mxu0 0
        %535 = vmatprep.subr.bf16.mxu0 0
        %536 = vmatpush1.bf16.msra.mxu0 0
        %537 = vmatprep.subr.bf16.mxu0 0
        %538 = vmatpush1.bf16.msra.mxu0 0
        %539 = vmatprep.subr.bf16.mxu0 0
        %540 = vmatpush1.bf16.msra.mxu0 0
        %541 = vmatprep.subr.bf16.mxu0 0
        %542 = vmatpush1.bf16.msra.mxu0 0
        %543 = vmatprep.subr.bf16.mxu0 0
        %544 = vmatpush1.bf16.msra.mxu0 0
        %545 = vmatprep.subr.bf16.mxu0 0
        %546 = vmatpush1.bf16.msra.mxu0 0
        %547 = vmatprep.subr.bf16.mxu0 0
        %548 = vmatpush1.bf16.msra.mxu0 0
        %549 = vmatprep.subr.bf16.mxu0 0
        %550 = vmatpush1.bf16.msra.mxu0 0
        %551 = vmatprep.subr.bf16.mxu0 0
        %552 = vmatpush1.bf16.msra.mxu0 0
        %553 = vmatprep.subr.bf16.mxu0 0
        %554 = vmatpush1.bf16.msra.mxu0 0
        %555 = vmatprep.mubr.bf16.mxu0 0
        %556 = vmatmul.mubr.bf16.gmra.mrb[0].mxu0 %v517
        %v557 = vpop.f32.mrb[0].mxu0
        %v558 = vadd.f32 0.0, %v557
        %v559 = vpop.f32.mrb[0].mxu0
        %v560 = vpop.f32.mrb[0].mxu0
        %v561 = vpop.f32.mrb[0].mxu0
        %562 = vdwg.mxu0
        %v563 = vadd.f32 %v514, %v558
        %564 = vst.msk [vmem:[#allocation4] sm:$0xff] %vm426, %v563
        %565 = vst.msk [vmem:[#allocation2] sm:$0xff] %vm506, %v488
      $region44: #{transformer_forward.16} parent=31 // pred_fallthru
        _
      // Predicated region
      $region45: #{transformer_forward.16} parent=31 // pred_check
        %p566 = pneg %p261
      $region46: #{transformer_forward.16} parent=31 // pred_check_branch
        %568 = sbr.rel (%p566) target = $region48
      $region47: #{transformer_forward.16} parent=31 // pred_region
        %v569 = vld [vmem:[#allocation4] sm:$0xff]
        %v570 = vld [vmem:[#allocation3] sm:$0xff]
        %v571 = vrcp.pop %v570
        %573 = vset.pattern.permute.xlu0 0
        %574 = vperm.xlu0 %573, %v571
        %v575 = vpop.permute.xlu0 %574
        %v577 = vmul.f32 %v569, %v575
        %v578 = vpack.c.bf16 %v577, %v577
        %vm579 = vcmask 125952
        %580 = vst.msk [vmem:[%s259] sm:$0xf] %vm579, %v578
      $region48: #{transformer_forward.16} parent=31 // pred_fallthru
        _
      %p581 = scmp.lt.s32.totalorder %s19, 7
      %s582 = scalar_select %p581, %s19, 7
      %p583 = scmp.lt.s32.totalorder %s20, 0
      %s584 = scalar_select %p583, %s20, 0
      %s585 = sadd.s32 %s584, %s582
      %s586 = smul.addr %s585, 4
      %s587 = scalar_lea.vmem %s3, %s586
      // Predicated region
      $region49: #{transformer_forward.16} parent=31 // pred_check
        %p588 = pneg %p137
      $region50: #{transformer_forward.16} parent=31 // pred_check_branch
        %590 = sbr.rel (%p588) target = $region52
      $region51: #{transformer_forward.16} parent=31 // pred_region
        _
      $region52: #{transformer_forward.16} parent=31 // pred_fallthru
        _
    $region32: #{transformer_forward.16} parent=5 // pred_fallthru
      _
    %p591 = scmp.le.s32.totalorder 2, %s9
    // Predicated region
    $region53: #{transformer_forward.16} parent=5 // pred_check
      %p592 = pneg %p591
    $region54: #{transformer_forward.16} parent=5 // pred_check_branch
      %594 = sbr.rel (%p592) target = $region56
    $region55: #{transformer_forward.16} parent=5 // pred_region
      %s595 = ssub.s32 %s9, 2
      // Predicated region
      $region57: #{transformer_forward.16} parent=55 // pred_check
        %p596 = pneg %p143
      $region58: #{transformer_forward.16} parent=55 // pred_check_branch
        %598 = sbr.rel (%p596) target = $region60
      $region59: #{transformer_forward.16} parent=55 // pred_region
        %p599 = scmp.lt.s32.totalorder %s22, 7
        %s600 = scalar_select %p599, %s22, 7
        %p601 = scmp.lt.s32.totalorder %s23, 0
        %s602 = scalar_select %p601, %s23, 0
        %s603 = sadd.s32 %s602, %s600
        %s604 = smul.addr %s603, 4
        %s605 = scalar_lea.vmem %s3, %s604
      $region60: #{transformer_forward.16} parent=55 // pred_fallthru
        _
    $region56: #{transformer_forward.16} parent=5 // pred_fallthru
      _
  $region6: #{transformer_forward.16} parent=0 // loop_footer
    %s13 = sadd.s32 1, %s9
  $region7: #{transformer_forward.16} parent=0 // loop_footer_branch
    %8 = sbr.rel target = $region3
  $region8: #{transformer_forward.16} parent=0 // loop_exit
    _

// kernel: transformer_forward.27
$region0: #{transformer_forward.27}
  #allocation0 [shape = 'u32[]', space=smem, size = 0x4, offset = 0x4, fixed_abs, tag = 'smem constant byte address 0x4 - core index']
  #allocation1 [shape = 'u32[144,128]{1,0:T(1,128)}', space=vmem, size = 0x12000, scoped, tag = 'internal scratch']
  %s0 = inlined_call_operand.vmem [shape: bf16[16,64], index: 0, kind: input, shape index: {}]
  %s1 = inlined_call_operand.vmem [shape: bf16[64,128], index: 1, kind: input, shape index: {}]
  %s2 = inlined_call_operand.hbm [shape: f32[16,128], index: 2, kind: output, shape index: {}]
  %s3 = sld [smem:[#allocation0]]
  $region22: #{transformer_forward.27} parent=0
    _
  %s5 = ssub.s32 1, %s3
  %s6 = scalar_select 0, %s5, %s3
  $region1: #{transformer_forward.27} parent=0
    #allocation2 [shape = 'u8[8192]{0}', space=vmem, size = 0x2000, scoped, tag = 'output window, operand 0, single buffered']
    #allocation3 [shape = 's32[1]{0}', space=sflag, size = 0x4, scoped, tag = 'scoped memory for transformer_forward.27']
    %7 = vsyncpa [#allocation3], 0
    // Predicated region
    $region2: #{transformer_forward.27} parent=1 // pred_check
      _
    $region3: #{transformer_forward.27} parent=1 // pred_check_branch
      %9 = sbr.rel (0) target = $region5
    $region4: #{transformer_forward.27} parent=1 // pred_region
      _
    $region5: #{transformer_forward.27} parent=1 // pred_fallthru
      _
    // Predicated region
    $region6: #{transformer_forward.27} parent=1 // pred_check
      _
    $region7: #{transformer_forward.27} parent=1 // pred_check_branch
      %11 = sbr.rel (0) target = $region9
    $region8: #{transformer_forward.27} parent=1 // pred_region
      _
    $region9: #{transformer_forward.27} parent=1 // pred_fallthru
      _
    %p13 = scmp.eq.s32.totalorder 0, 0
    // Predicated region
    $region10: #{transformer_forward.27} parent=1 // pred_check
      %p14 = pneg %p13
    $region11: #{transformer_forward.27} parent=1 // pred_check_branch
      %16 = sbr.rel (%p14) target = $region13
    $region12: #{transformer_forward.27} parent=1 // pred_region
      %17 = vst [vmem:[#allocation2] sm:$0xff] 0.0
      %18 = vst [vmem:[#allocation2 + $0x8] sm:$0xff] 0.0
    $region13: #{transformer_forward.27} parent=1 // pred_fallthru
      _
    %v19 = vld [vmem:[#allocation2] sm:$0xff]
    %v20 = vld [vmem:[#allocation2 + $0x8] sm:$0xff]
    %v21 = vld [vmem:[%s0] sm:$0xf]
    %v22 = vld [vmem:[%s0 + $0x4] sm:$0xf]
    %v23 = vld [vmem:[%s1] sm:$0xf]
    %v24 = vld [vmem:[%s1 + $0x4] sm:$0xf]
    %v25 = vld [vmem:[%s1 + $0x8] sm:$0xf]
    %v26 = vld [vmem:[%s1 + $0xc] sm:$0xf]
    %v27 = vld [vmem:[%s1 + $0x10] sm:$0xf]
    %v28 = vld [vmem:[%s1 + $0x14] sm:$0xf]
    %v29 = vld [vmem:[%s1 + $0x18] sm:$0xf]
    %v30 = vld [vmem:[%s1 + $0x1c] sm:$0xf]
    %v33 = vunpack.c.l.b16 %v21
    %v34 = vunpack.c.l.b16 %v22
    %v35 = vpack.c.b16 %v34, %v33
    %v44 = vunpack.c.l.b16 %v23
    %v45 = vunpack.c.l.b16 %v24
    %v46 = vunpack.c.l.b16 %v25
    %v47 = vunpack.c.l.b16 %v26
    %v48 = vunpack.c.l.b16 %v27
    %v49 = vunpack.c.l.b16 %v28
    %v50 = vunpack.c.l.b16 %v29
    %v51 = vunpack.c.l.b16 %v30
    %v52 = vpack.c.b16 %v45, %v44
    %v53 = vpack.c.b16 %v47, %v46
    %v54 = vpack.c.b16 %v49, %v48
    %v55 = vpack.c.b16 %v51, %v50
    %vm60 = vcmask 523264
    %v62 = vsel %vm60, %v35, 0
    %64 = vmatprep.subr.bf16.mxu0 0
    %65 = vmatpush1.bf16.msra.mxu0 %v52
    %66 = vmatprep.subr.bf16.mxu0 0
    %67 = vmatpush1.bf16.msra.mxu0 %v53
    %68 = vmatprep.subr.bf16.mxu0 0
    %69 = vmatpush1.bf16.msra.mxu0 %v54
    %70 = vmatprep.subr.bf16.mxu0 0
    %71 = vmatpush1.bf16.msra.mxu0 %v55
    %72 = vmatprep.subr.bf16.mxu0 0
    %73 = vmatpush1.bf16.msra.mxu0 0
    %74 = vmatprep.subr.bf16.mxu0 0
    %75 = vmatpush1.bf16.msra.mxu0 0
    %76 = vmatprep.subr.bf16.mxu0 0
    %77 = vmatpush1.bf16.msra.mxu0 0
    %78 = vmatprep.subr.bf16.mxu0 0
    %79 = vmatpush1.bf16.msra.mxu0 0
    %80 = vmatprep.subr.bf16.mxu0 0
    %81 = vmatpush1.bf16.msra.mxu0 0
    %82 = vmatprep.subr.bf16.mxu0 0
    %83 = vmatpush1.bf16.msra.mxu0 0
    %84 = vmatprep.subr.bf16.mxu0 0
    %85 = vmatpush1.bf16.msra.mxu0 0
    %86 = vmatprep.subr.bf16.mxu0 0
    %87 = vmatpush1.bf16.msra.mxu0 0
    %88 = vmatprep.subr.bf16.mxu0 0
    %89 = vmatpush1.bf16.msra.mxu0 0
    %90 = vmatprep.subr.bf16.mxu0 0
    %91 = vmatpush1.bf16.msra.mxu0 0
    %92 = vmatprep.subr.bf16.mxu0 0
    %93 = vmatpush1.bf16.msra.mxu0 0
    %94 = vmatprep.subr.bf16.mxu0 0
    %95 = vmatpush1.bf16.msra.mxu0 0
    %96 = vmatprep.mubr.bf16.mxu0 0
    %97 = vmatmul.mubr.bf16.gmra.mrb[0].mxu0 %v62
    %v98 = vpop.f32.mrb[0].mxu0
    %v99 = vadd.f32 0.0, %v98
    %v100 = vpop.f32.mrb[0].mxu0
    %v101 = vpop.f32.mrb[0].mxu0
    %v102 = vadd.f32 0.0, %v101
    %v103 = vpop.f32.mrb[0].mxu0
    %104 = vdwg.mxu0
    %v105 = vadd.f32 %v19, %v99
    %v106 = vadd.f32 %v20, %v102
    %107 = vst [vmem:[#allocation2] sm:$0xff] %v105
    %108 = vst [vmem:[#allocation2 + $0x8] sm:$0xff] %v106
    // Predicated region
    $region14: #{transformer_forward.27} parent=1 // pred_check
      _
    $region15: #{transformer_forward.27} parent=1 // pred_check_branch
      %110 = sbr.rel (0) target = $region17
    $region16: #{transformer_forward.27} parent=1 // pred_region
      %s112 = ssub.s32 256, 256
      %113 = vsyncadd [#allocation3], %s112
      %s114 = sshll.u32 [#allocation2], 4
      %s115 = int_to_ptr.vmem [resolvable:$true] %s114
      %120 = dma.vmem_to_hbm [thread:$0]  %s115, 256, %s2, [#allocation3], 128, 128, 8
    $region17: #{transformer_forward.27} parent=1 // pred_fallthru
      _
    // Predicated region
    $region18: #{transformer_forward.27} parent=1 // pred_check
      _
    $region19: #{transformer_forward.27} parent=1 // pred_check_branch
      %122 = sbr.rel (0) target = $region21
    $region20: #{transformer_forward.27} parent=1 // pred_region
      %123 = dma.done [#allocation3], 256
    $region21: #{transformer_forward.27} parent=1 // pred_fallthru
      _
    %124 = vsyncpa [#allocation3], 1

</llo_original>
